<compile_context>
chip_gen: v5e
topology: v5e:2x2
jax: 0.10.0
libtpu: 0.0.40
codegen_flags: <defaults>
</compile_context>

<pallas_src>
import functools
import math

import jax
import jax.numpy as jnp
from jax import lax
from jax.experimental import pallas as pl
from jax.experimental.pallas import tpu as pltpu  # noqa: F401  (TPU backend)

# anchor layout indices (Sparse4D convention)
X, Y, Z, W, L, H, SIN_YAW, COS_YAW = 0, 1, 2, 3, 4, 5, 6, 7

LN_EPS = 1e-5


def _ln(x, g, b):
    """LayerNorm over last dim (usable inside kernels)."""
    mu = jnp.mean(x, axis=-1, keepdims=True)
    var = jnp.mean((x - mu) ** 2, axis=-1, keepdims=True)
    return (x - mu) * lax.rsqrt(var + LN_EPS) * g + b


def _mxu(x, w):
    """MXU matmul: bf16 operands, f32 accumulation (fast on v6e/v7x, fine on v5e)."""
    return jnp.dot(x.astype(jnp.bfloat16), w.astype(jnp.bfloat16),
                   preferred_element_type=jnp.float32)


# --------------------------------------------------------------------------
# The single fused kernel
# --------------------------------------------------------------------------
def _fused_kernel(bf_ref, qpos_ref, anc_ref, xyz_ref,
                  roi_w1_ref, roi_w2_ref, roi_vec_ref,
                  wqkv_ref, bqkv_ref, wo_ref, bo_ref,
                  out_ref, *, num_heads, k_top):
    n, a_dim, f = bf_ref.shape          # agents, anchors, feature dim
    na = xyz_ref.shape[-1]              # n * a_dim
    nn_ = n - 1
    dh = f // num_heads
    scale = 1.0 / math.sqrt(dh)

    bf = bf_ref[...]                                   # [N, A, F]
    bf_flat = bf.reshape(n * a_dim, f)                 # free reshape (A % 8 == 0)

    # ---- 1. ROI scores: sigmoid(refinement.cls_layers(b_feature)) ----------
    # TODO(synk): `refinement` is an external module; its cls_layers is modeled
    # with the same linear_relu_ln(F,1,2)+Linear(F,1) structure as self.cls_layers.
    vec = roi_vec_ref[...]                             # [8, F] packed biases/ln/w3
    h = jnp.maximum(_mxu(bf_flat, roi_w1_ref[...]) + vec[0:1, :], 0.0)
    h = _ln(h, vec[1:2, :], vec[2:3, :])
    h = jnp.maximum(_mxu(h, roi_w2_ref[...]) + vec[3:4, :], 0.0)
    h = _ln(h, vec[4:5, :], vec[5:6, :])
    logit = jnp.sum(h.reshape(n, a_dim, f) * vec[6:7, :], axis=-1)      # [N, A]
    roi = jax.nn.sigmoid(logit + vec[7:8, 0:1])                         # [N, A]

    # ---- 2. in-kernel top-K + confidence(>0.7) as a per-anchor weight ------
    # wsel[j, b] = 1  iff anchor b is in agent j's top-K AND its score > 0.7.
    # The reference's gather->mask->containment-sum is algebraically identical
    # to weighting the full feature tensor with wsel, so no gather is needed.
    col = lax.broadcasted_iota(jnp.int32, (n, a_dim), 1).astype(jnp.float32)
    scores = roi
    wsel = jnp.zeros((n, a_dim), jnp.float32)
    for _ in range(k_top):                             # K is small & static
        m = jnp.max(scores, axis=-1, keepdims=True)                     # [N, 1]
        first = jnp.min(jnp.where(scores >= m, col, float(a_dim)),
                        axis=-1, keepdims=True)        # tie -> lowest index
        onehot = col == first                                           # [N, A]
        conf = (m > 0.7).astype(jnp.float32)                            # [N, 1]
        wsel = wsel + jnp.where(onehot, conf, 0.0)
        scores = jnp.where(onehot, -1.0, scores)       # sigmoid > 0, so -1 removes

    # ---- 3. cross-agent MHA (mmcv semantics), batched over neighbors -------
    # q = ego + query_pos, k = neighbor + query_pos, v = neighbor,
    # out_b = identity + attn_b;  res = sum_b out_b  (identity & bo counted
    # (N-1) times, exactly like torch.sum over the expanded batch dim).
    qpos = qpos_ref[...]                               # [A, F]
    ident = bf[0]                                      # [A, F]  ego features
    wqkv = wqkv_ref[...]                               # [F, 3F] packed q|k|v (bf16)
    proj = _mxu(bf_flat, wqkv) + bqkv_ref[...]         # [N*A, 3F]
    proj = proj.reshape(n, a_dim, 3 * f)
    qpos_proj = _mxu(qpos, wqkv)                       # [A, 3F] (no bias)

    q_lin = proj[0, :, 0:f] + qpos_proj[:, 0:f]                      # [A, F]
    k_lin = proj[1:, :, f:2 * f] + qpos_proj[None, :, f:2 * f]       # [nn, A, F]
    v_lin = proj[1:, :, 2 * f:3 * f]                                 # [nn, A, F]

    head_outs = []
    for hh in range(num_heads):                        # static, lane slices only
        sl = slice(hh * dh, (hh + 1) * dh)
        qh = jnp.broadcast_to(q_lin[:, sl][None], (nn_, a_dim, dh))
        kh = k_lin[:, :, sl]
        vh = v_lin[:, :, sl]
        s = jnp.einsum("bad,bcd->bac", qh.astype(jnp.bfloat16),
                       kh.astype(jnp.bfloat16),
                       preferred_element_type=jnp.float32) * scale   # [nn, A, A]
        s = s - jnp.max(s, axis=-1, keepdims=True)
        p = jnp.exp(s)
        p = p * pl.reciprocal(jnp.sum(p, axis=-1, keepdims=True), approx=False)
        o = jnp.einsum("bac,bcd->bad", p.astype(jnp.bfloat16),
                       vh.astype(jnp.bfloat16),
                       preferred_element_type=jnp.float32)           # [nn, A, dh]
        head_outs.append(jnp.sum(o, axis=0))           # sum over neighbors
    x_cat = jnp.concatenate(head_outs, axis=-1)        # [A, F] concat heads
    o_sum = _mxu(x_cat, wo_ref[...])                   # single output projection
    res = nn_ * (ident + bo_ref[...]) + o_sum          # [A, F]
    # NOTE: the reference computes b_ego_feature = self.norm(res) and then
    # discards it (overwritten by `b_feature = res`); the dead LayerNorm is
    # skipped, and the dead key_pos / transformencoding / anchorencoder branch
    # is removed entirely (never consumed by att()).

    # ---- 4. bbox-containment aggregation ------------------------------------
    # TODO(synk): compute_features_and_mask_efficient and
    # calculate_bbox_corners_with_orientation are external helpers; assumed
    # semantics: sum confident selected neighbor features whose box centers
    # fall inside each ego anchor's yaw-aware axis-aligned corner range.
    cx, cy, cz = anc_ref[X], anc_ref[Y], anc_ref[Z]                  # [N, A]
    sw = jnp.exp(anc_ref[W]); sl_ = jnp.exp(anc_ref[L]); sh = jnp.exp(anc_ref[H])
    asin, acos = jnp.abs(anc_ref[SIN_YAW]), jnp.abs(anc_ref[COS_YAW])
    hx = 0.5 * (acos * sw + asin * sl_)
    hy = 0.5 * (asin * sw + acos * sl_)
    hz = 0.5 * sh

    def _inside(ctr, lo, hi):          # ctr:[N,NA], lo/hi:[N,A] -> [N,A,NA] bool
        c = ctr[:, None, :]
        return (c >= lo[:, :, None]) & (c <= hi[:, :, None])

    ins = (_inside(xyz_ref[0], cx - hx, cx + hx)
           & _inside(xyz_ref[1], cy - hy, cy + hy)
           & _inside(xyz_ref[2], cz - hz, cz + hz))                  # [N, A, NA]

    # exclude contributions from the ego agent itself (j == i)
    mi = lax.broadcasted_iota(jnp.int32, (n, na), 1)
    ii = lax.broadcasted_iota(jnp.int32, (n, na), 0)
    same_agent = (mi >= ii * a_dim) & (mi < (ii + 1) * a_dim)
    offd = jnp.where(same_agent, 0.0, 1.0)                           # [N, NA] f32

    w_mask = jnp.where(ins, 1.0, 0.0) * offd[:, None, :]             # [N, A, NA]
    wf = bf * wsel[:, :, None]                         # selected+confident feats
    agg = jnp.dot(w_mask.reshape(n * a_dim, na), wf.reshape(na, f),
                  preferred_element_type=jnp.float32)  # [N*A, F], exact f32 sum
    out_ref[...] = res[None, :, :] + agg.reshape(n, a_dim, f)        # single store


# --------------------------------------------------------------------------
# Wrapper (one pallas_call; host side only does trivial layout prep)
# --------------------------------------------------------------------------
def point_encoder_v6_forward(params, i2j_anchor, b_anchor, b_feature,
                             transform_matrix, anchor_embed, K, num_heads, step=1):
    N, A, D = b_anchor.shape
    F_ = b_feature.shape[-1]
    assert F_ % num_heads == 0
    # transform_matrix only feeds the dead key_pos branch in the reference -> unused.
    del transform_matrix

    qpos = anchor_embed[0]                                           # [A, F]
    anchor_t = jnp.moveaxis(b_anchor, -1, 0)                         # [D, N, A]
    xyz_t = jnp.moveaxis(i2j_anchor[..., 0:3].reshape(N, N * A, 3), -1, 0)  # [3, N, N*A]

    p = params
    kernel = functools.partial(_fused_kernel, num_heads=num_heads, k_top=K)
    # Grid-less single block: every operand is a few KB, far below VMEM limits
    # on v5e/v6e/v7x.  (At production sparse4D sizes one would add a grid over
    # ego agents / anchor tiles with dimension_semantics=("parallel", ...).)
    feat = pl.pallas_call(
        kernel,
        out_shape=jax.ShapeDtypeStruct((N, A, F_), jnp.float32),
    )(b_feature, qpos, anchor_t, xyz_t,
      p["roi_w1"], p["roi_w2"], p["roi_vec"],
      p["att_wqkv"], p["att_bqkv"], p["att_wo"], p["att_bo"])

    if step == 2:
        # TODO(synk): full `refinement(...)` head + get_anchor_box decode are
        # external modules not defined in the reference; only step != 2 is implemented.
        raise NotImplementedError("step == 2 requires the external refinement module")
    return None, None, None, b_anchor, feat


# --------------------------------------------------------------------------
# Deterministic parameter construction (packed layouts for the kernel)
# --------------------------------------------------------------------------
def _dense(key, fan_in, fan_out):
    lim = 1.0 / math.sqrt(fan_in)
    kw, kb = jax.random.split(key)
    w = jax.random.uniform(kw, (fan_in, fan_out), jnp.float32, -lim, lim)
    b = jax.random.uniform(kb, (fan_out,), jnp.float32, -lim, lim)
    return w, b


def init_params(key, F_):
    ks = list(jax.random.split(key, 8))
    ones = lambda s: jnp.ones(s, jnp.float32)
    zeros = lambda s: jnp.zeros(s, jnp.float32)

    # refinement.cls_layers stand-in: linear_relu_ln(F,1,2) + Linear(F,1)
    w1, b1 = _dense(ks[0], F_, F_)
    w2, b2 = _dense(ks[1], F_, F_)
    w3, b3 = _dense(ks[2], F_, 1)
    roi_vec = jnp.stack([b1, ones((F_,)), zeros((F_,)),
                         b2, ones((F_,)), zeros((F_,)),
                         w3[:, 0], jnp.broadcast_to(b3, (F_,))], axis=0)   # [8, F]

    # MultiheadAttention: packed in-projection [F, 3F] (x @ W convention),
    # output projection [F, F].  Weights stored bf16 (MXU operands).
    wq, bq = _dense(ks[3], F_, F_)
    wk, bk = _dense(ks[4], F_, F_)
    wv, bv = _dense(ks[5], F_, F_)
    wo, bo = _dense(ks[6], F_, F_)
    att_wqkv = jnp.concatenate([wq, wk, wv], axis=1)                 # [F, 3F]
    att_bqkv = jnp.concatenate([bq, bk, bv], axis=0)[None, :]        # [1, 3F]

    return dict(
        roi_w1=w1.astype(jnp.bfloat16),
        roi_w2=w2.astype(jnp.bfloat16),
        roi_vec=roi_vec,
        att_wqkv=att_wqkv.astype(jnp.bfloat16),
        att_bqkv=att_bqkv,
        att_wo=wo.astype(jnp.bfloat16),
        att_bo=bo[None, :],
    )


# --------------------------------------------------------------------------
if __name__ == "__main__":
    key = jax.random.PRNGKey(0)
    N, A, D, F_, NUM_HEADS, K = 3, 16, 8, 32, 2, 4

    k1, k2, k3, k4, k5, k6 = jax.random.split(key, 6)
    b_anchor = 0.5 * jax.random.normal(k1, (N, A, D), jnp.float32)
    i2j_anchor = 0.5 * jax.random.normal(k2, (N, N, A, D), jnp.float32)
    b_feature = jax.random.normal(k3, (N, A, F_), jnp.float32)
    transform_matrix = (jnp.broadcast_to(jnp.eye(4, dtype=jnp.float32), (N, N, 4, 4))
                        + 0.01 * jax.random.normal(k4, (N, N, 4, 4), jnp.float32))
    anchor_embed = jax.random.normal(k5, (N, A, F_), jnp.float32)

    params = init_params(k6, F_)

    fwd = jax.jit(point_encoder_v6_forward,
                  static_argnames=("K", "num_heads", "step"))
    cls_o, box_o, dir_o, anchor_out, feat_out = fwd(
        params, i2j_anchor, b_anchor, b_feature, transform_matrix,
        anchor_embed, K=K, num_heads=NUM_HEADS, step=1)

    jax.block_until_ready(feat_out)
    assert anchor_out.shape == (N, A, D)
    assert feat_out.shape == (N, A, F_)
    print("KERNEL_OK")
</pallas_src>

<mosaic_0001>
module attributes {stable_mosaic.version = 11 : i64} {
  func.func @_fused_kernel(%arg0: memref<3x16x32xf32, #tpu.memory_space<vmem>>, %arg1: memref<16x32xf32, #tpu.memory_space<vmem>>, %arg2: memref<8x3x16xf32, #tpu.memory_space<vmem>>, %arg3: memref<3x3x48xf32, #tpu.memory_space<vmem>>, %arg4: memref<32x32xbf16, #tpu.memory_space<vmem>>, %arg5: memref<32x32xbf16, #tpu.memory_space<vmem>>, %arg6: memref<8x32xf32, #tpu.memory_space<vmem>>, %arg7: memref<32x96xbf16, #tpu.memory_space<vmem>>, %arg8: memref<1x96xf32, #tpu.memory_space<vmem>>, %arg9: memref<32x32xbf16, #tpu.memory_space<vmem>>, %arg10: memref<1x32xf32, #tpu.memory_space<vmem>>, %arg11: memref<3x16x32xf32, #tpu.memory_space<vmem>>) attributes {dimension_semantics = [], scalar_prefetch = 0 : i64, scratch_operands = 0 : i64, tpu.core_type = #tpu.core_type<tc>} {
    %c0 = arith.constant 0 : index
    %c0_0 = arith.constant 0 : index
    %c0_1 = arith.constant 0 : index
    %0 = vector.load %arg0[%c0, %c0_0, %c0_1] : memref<3x16x32xf32, #tpu.memory_space<vmem>>, vector<3x16x32xf32>
    %1 = vector.shape_cast %0 : vector<3x16x32xf32> to vector<48x32xf32>
    %c0_2 = arith.constant 0 : index
    %c0_3 = arith.constant 0 : index
    %2 = vector.load %arg6[%c0_2, %c0_3] : memref<8x32xf32, #tpu.memory_space<vmem>>, vector<8x32xf32>
    %c0_4 = arith.constant 0 : index
    %c0_5 = arith.constant 0 : index
    %3 = vector.load %arg4[%c0_4, %c0_5] : memref<32x32xbf16, #tpu.memory_space<vmem>>, vector<32x32xbf16>
    %4 = arith.truncf %1 : vector<48x32xf32> to vector<48x32xbf16>
    %cst = arith.constant dense<0.000000e+00> : vector<48x32xf32>
    %5 = tpu.matmul %4, %3, %cst {dimension_numbers = #tpu.dot_dimension_numbers<[1], [0], [0], [1], [0, 0, 1, 1], [], []>} : vector<48x32xbf16>, vector<32x32xbf16>, vector<48x32xf32> -> vector<48x32xf32>
    %6 = vector.extract_strided_slice %2 {offsets = [0, 0], sizes = [1, 32], strides = [1, 1]} : vector<8x32xf32> to vector<1x32xf32>
    %7 = vector.broadcast %6 : vector<1x32xf32> to vector<48x32xf32>
    %8 = arith.addf %5, %7 : vector<48x32xf32>
    %cst_6 = arith.constant 0.000000e+00 : f32
    %9 = vector.broadcast %cst_6 : f32 to vector<48x32xf32>
    %10 = arith.maximumf %8, %9 : vector<48x32xf32>
    %11 = vector.extract_strided_slice %2 {offsets = [1, 0], sizes = [1, 32], strides = [1, 1]} : vector<8x32xf32> to vector<1x32xf32>
    %12 = vector.extract_strided_slice %2 {offsets = [2, 0], sizes = [1, 32], strides = [1, 1]} : vector<8x32xf32> to vector<1x32xf32>
    %cst_7 = arith.constant dense<0.000000e+00> : vector<48xf32>
    %13 = vector.multi_reduction <add>, %10, %cst_7 [1] : vector<48x32xf32> to vector<48xf32>
    %14 = vector.shape_cast %13 : vector<48xf32> to vector<48x1xf32>
    %cst_8 = arith.constant 3.200000e+01 : f32
    %15 = vector.broadcast %cst_8 : f32 to vector<48x1xf32>
    %16 = arith.divf %14, %15 : vector<48x1xf32>
    %17 = vector.broadcast %16 : vector<48x1xf32> to vector<48x32xf32>
    %18 = arith.subf %10, %17 : vector<48x32xf32>
    %19 = arith.mulf %18, %18 : vector<48x32xf32>
    %cst_9 = arith.constant dense<0.000000e+00> : vector<48xf32>
    %20 = vector.multi_reduction <add>, %19, %cst_9 [1] : vector<48x32xf32> to vector<48xf32>
    %21 = vector.shape_cast %20 : vector<48xf32> to vector<48x1xf32>
    %cst_10 = arith.constant 3.200000e+01 : f32
    %22 = vector.broadcast %cst_10 : f32 to vector<48x1xf32>
    %23 = arith.divf %21, %22 : vector<48x1xf32>
    %24 = vector.broadcast %16 : vector<48x1xf32> to vector<48x32xf32>
    %25 = arith.subf %10, %24 : vector<48x32xf32>
    %cst_11 = arith.constant 9.99999974E-6 : f32
    %26 = vector.broadcast %cst_11 : f32 to vector<48x1xf32>
    %27 = arith.addf %23, %26 : vector<48x1xf32>
    %28 = math.rsqrt %27 : vector<48x1xf32>
    %29 = vector.broadcast %28 : vector<48x1xf32> to vector<48x32xf32>
    %30 = arith.mulf %25, %29 : vector<48x32xf32>
    %31 = vector.broadcast %11 : vector<1x32xf32> to vector<48x32xf32>
    %32 = arith.mulf %30, %31 : vector<48x32xf32>
    %33 = vector.broadcast %12 : vector<1x32xf32> to vector<48x32xf32>
    %34 = arith.addf %32, %33 : vector<48x32xf32>
    %c0_12 = arith.constant 0 : index
    %c0_13 = arith.constant 0 : index
    %35 = vector.load %arg5[%c0_12, %c0_13] : memref<32x32xbf16, #tpu.memory_space<vmem>>, vector<32x32xbf16>
    %36 = arith.truncf %34 : vector<48x32xf32> to vector<48x32xbf16>
    %cst_14 = arith.constant dense<0.000000e+00> : vector<48x32xf32>
    %37 = tpu.matmul %36, %35, %cst_14 {dimension_numbers = #tpu.dot_dimension_numbers<[1], [0], [0], [1], [0, 0, 1, 1], [], []>} : vector<48x32xbf16>, vector<32x32xbf16>, vector<48x32xf32> -> vector<48x32xf32>
    %38 = vector.extract_strided_slice %2 {offsets = [3, 0], sizes = [1, 32], strides = [1, 1]} : vector<8x32xf32> to vector<1x32xf32>
    %39 = vector.broadcast %38 : vector<1x32xf32> to vector<48x32xf32>
    %40 = arith.addf %37, %39 : vector<48x32xf32>
    %cst_15 = arith.constant 0.000000e+00 : f32
    %41 = vector.broadcast %cst_15 : f32 to vector<48x32xf32>
    %42 = arith.maximumf %40, %41 : vector<48x32xf32>
    %43 = vector.extract_strided_slice %2 {offsets = [4, 0], sizes = [1, 32], strides = [1, 1]} : vector<8x32xf32> to vector<1x32xf32>
    %44 = vector.extract_strided_slice %2 {offsets = [5, 0], sizes = [1, 32], strides = [1, 1]} : vector<8x32xf32> to vector<1x32xf32>
    %cst_16 = arith.constant dense<0.000000e+00> : vector<48xf32>
    %45 = vector.multi_reduction <add>, %42, %cst_16 [1] : vector<48x32xf32> to vector<48xf32>
    %46 = vector.shape_cast %45 : vector<48xf32> to vector<48x1xf32>
    %cst_17 = arith.constant 3.200000e+01 : f32
    %47 = vector.broadcast %cst_17 : f32 to vector<48x1xf32>
    %48 = arith.divf %46, %47 : vector<48x1xf32>
    %49 = vector.broadcast %48 : vector<48x1xf32> to vector<48x32xf32>
    %50 = arith.subf %42, %49 : vector<48x32xf32>
    %51 = arith.mulf %50, %50 : vector<48x32xf32>
    %cst_18 = arith.constant dense<0.000000e+00> : vector<48xf32>
    %52 = vector.multi_reduction <add>, %51, %cst_18 [1] : vector<48x32xf32> to vector<48xf32>
    %53 = vector.shape_cast %52 : vector<48xf32> to vector<48x1xf32>
    %cst_19 = arith.constant 3.200000e+01 : f32
    %54 = vector.broadcast %cst_19 : f32 to vector<48x1xf32>
    %55 = arith.divf %53, %54 : vector<48x1xf32>
    %56 = vector.broadcast %48 : vector<48x1xf32> to vector<48x32xf32>
    %57 = arith.subf %42, %56 : vector<48x32xf32>
    %cst_20 = arith.constant 9.99999974E-6 : f32
    %58 = vector.broadcast %cst_20 : f32 to vector<48x1xf32>
    %59 = arith.addf %55, %58 : vector<48x1xf32>
    %60 = math.rsqrt %59 : vector<48x1xf32>
    %61 = vector.broadcast %60 : vector<48x1xf32> to vector<48x32xf32>
    %62 = arith.mulf %57, %61 : vector<48x32xf32>
    %63 = vector.broadcast %43 : vector<1x32xf32> to vector<48x32xf32>
    %64 = arith.mulf %62, %63 : vector<48x32xf32>
    %65 = vector.broadcast %44 : vector<1x32xf32> to vector<48x32xf32>
    %66 = arith.addf %64, %65 : vector<48x32xf32>
    %67 = vector.shape_cast %66 : vector<48x32xf32> to vector<3x16x32xf32>
    %68 = vector.extract_strided_slice %2 {offsets = [6, 0], sizes = [1, 32], strides = [1, 1]} : vector<8x32xf32> to vector<1x32xf32>
    %69 = vector.shape_cast %68 : vector<1x32xf32> to vector<1x1x32xf32>
    %70 = vector.broadcast %69 : vector<1x1x32xf32> to vector<3x16x32xf32>
    %71 = arith.mulf %67, %70 : vector<3x16x32xf32>
    %cst_21 = arith.constant dense<0.000000e+00> : vector<3x16xf32>
    %72 = vector.multi_reduction <add>, %71, %cst_21 [2] : vector<3x16x32xf32> to vector<3x16xf32>
    %73 = vector.extract_strided_slice %2 {offsets = [7, 0], sizes = [1, 1], strides = [1, 1]} : vector<8x32xf32> to vector<1x1xf32>
    %74 = vector.broadcast %73 : vector<1x1xf32> to vector<3x16xf32>
    %75 = arith.addf %72, %74 : vector<3x16xf32>
    %76 = arith.negf %75 : vector<3x16xf32>
    %77 = math.exp %76 : vector<3x16xf32>
    %cst_22 = arith.constant 1.000000e+00 : f32
    %78 = vector.broadcast %cst_22 : f32 to vector<3x16xf32>
    %79 = arith.addf %78, %77 : vector<3x16xf32>
    %80 = arith.divf %78, %79 : vector<3x16xf32>
    %81 = tpu.iota {dimensions = array<i32: 1>} : vector<3x16xi32>
    %82 = arith.sitofp %81 : vector<3x16xi32> to vector<3x16xf32>
    %cst_23 = arith.constant 0.000000e+00 : f32
    %83 = vector.broadcast %cst_23 : f32 to vector<3x16xf32>
    %cst_24 = arith.constant dense<0xFF800000> : vector<3xf32>
    %84 = vector.multi_reduction <maximumf>, %80, %cst_24 [1] : vector<3x16xf32> to vector<3xf32>
    %85 = vector.shape_cast %84 : vector<3xf32> to vector<3x1xf32>
    %86 = vector.broadcast %85 : vector<3x1xf32> to vector<3x16xf32>
    %87 = arith.cmpf oge, %80, %86 : vector<3x16xf32>
    %cst_25 = arith.constant 1.600000e+01 : f32
    %88 = vector.broadcast %cst_25 : f32 to vector<3x16xf32>
    %89 = arith.select %87, %82, %88 : vector<3x16xi1>, vector<3x16xf32>
    %cst_26 = arith.constant dense<0x7F800000> : vector<3xf32>
    %90 = vector.multi_reduction <minimumf>, %89, %cst_26 [1] : vector<3x16xf32> to vector<3xf32>
    %91 = vector.shape_cast %90 : vector<3xf32> to vector<3x1xf32>
    %92 = vector.broadcast %91 : vector<3x1xf32> to vector<3x16xf32>
    %93 = arith.cmpf oeq, %82, %92 : vector<3x16xf32>
    %cst_27 = arith.constant 0.699999988 : f32
    %94 = vector.broadcast %cst_27 : f32 to vector<3x1xf32>
    %95 = arith.cmpf ogt, %85, %94 : vector<3x1xf32>
    %96 = arith.extui %95 : vector<3x1xi1> to vector<3x1xi32>
    %97 = arith.sitofp %96 : vector<3x1xi32> to vector<3x1xf32>
    %cst_28 = arith.constant 0.000000e+00 : f32
    %98 = vector.shape_cast %97 : vector<3x1xf32> to vector<3x1xf32>
    %99 = vector.broadcast %98 : vector<3x1xf32> to vector<3x16xf32>
    %100 = vector.broadcast %cst_28 : f32 to vector<3x16xf32>
    %101 = arith.select %93, %99, %100 : vector<3x16xi1>, vector<3x16xf32>
    %102 = arith.addf %83, %101 : vector<3x16xf32>
    %cst_29 = arith.constant -1.000000e+00 : f32
    %103 = vector.broadcast %cst_29 : f32 to vector<3x16xf32>
    %104 = arith.select %93, %103, %80 : vector<3x16xi1>, vector<3x16xf32>
    %cst_30 = arith.constant dense<0xFF800000> : vector<3xf32>
    %105 = vector.multi_reduction <maximumf>, %104, %cst_30 [1] : vector<3x16xf32> to vector<3xf32>
    %106 = vector.shape_cast %105 : vector<3xf32> to vector<3x1xf32>
    %107 = vector.broadcast %106 : vector<3x1xf32> to vector<3x16xf32>
    %108 = arith.cmpf oge, %104, %107 : vector<3x16xf32>
    %cst_31 = arith.constant 1.600000e+01 : f32
    %109 = vector.broadcast %cst_31 : f32 to vector<3x16xf32>
    %110 = arith.select %108, %82, %109 : vector<3x16xi1>, vector<3x16xf32>
    %cst_32 = arith.constant dense<0x7F800000> : vector<3xf32>
    %111 = vector.multi_reduction <minimumf>, %110, %cst_32 [1] : vector<3x16xf32> to vector<3xf32>
    %112 = vector.shape_cast %111 : vector<3xf32> to vector<3x1xf32>
    %113 = vector.broadcast %112 : vector<3x1xf32> to vector<3x16xf32>
    %114 = arith.cmpf oeq, %82, %113 : vector<3x16xf32>
    %cst_33 = arith.constant 0.699999988 : f32
    %115 = vector.broadcast %cst_33 : f32 to vector<3x1xf32>
    %116 = arith.cmpf ogt, %106, %115 : vector<3x1xf32>
    %117 = arith.extui %116 : vector<3x1xi1> to vector<3x1xi32>
    %118 = arith.sitofp %117 : vector<3x1xi32> to vector<3x1xf32>
    %cst_34 = arith.constant 0.000000e+00 : f32
    %119 = vector.shape_cast %118 : vector<3x1xf32> to vector<3x1xf32>
    %120 = vector.broadcast %119 : vector<3x1xf32> to vector<3x16xf32>
    %121 = vector.broadcast %cst_34 : f32 to vector<3x16xf32>
    %122 = arith.select %114, %120, %121 : vector<3x16xi1>, vector<3x16xf32>
    %123 = arith.addf %102, %122 : vector<3x16xf32>
    %cst_35 = arith.constant -1.000000e+00 : f32
    %124 = vector.broadcast %cst_35 : f32 to vector<3x16xf32>
    %125 = arith.select %114, %124, %104 : vector<3x16xi1>, vector<3x16xf32>
    %cst_36 = arith.constant dense<0xFF800000> : vector<3xf32>
    %126 = vector.multi_reduction <maximumf>, %125, %cst_36 [1] : vector<3x16xf32> to vector<3xf32>
    %127 = vector.shape_cast %126 : vector<3xf32> to vector<3x1xf32>
    %128 = vector.broadcast %127 : vector<3x1xf32> to vector<3x16xf32>
    %129 = arith.cmpf oge, %125, %128 : vector<3x16xf32>
    %cst_37 = arith.constant 1.600000e+01 : f32
    %130 = vector.broadcast %cst_37 : f32 to vector<3x16xf32>
    %131 = arith.select %129, %82, %130 : vector<3x16xi1>, vector<3x16xf32>
    %cst_38 = arith.constant dense<0x7F800000> : vector<3xf32>
    %132 = vector.multi_reduction <minimumf>, %131, %cst_38 [1] : vector<3x16xf32> to vector<3xf32>
    %133 = vector.shape_cast %132 : vector<3xf32> to vector<3x1xf32>
    %134 = vector.broadcast %133 : vector<3x1xf32> to vector<3x16xf32>
    %135 = arith.cmpf oeq, %82, %134 : vector<3x16xf32>
    %cst_39 = arith.constant 0.699999988 : f32
    %136 = vector.broadcast %cst_39 : f32 to vector<3x1xf32>
    %137 = arith.cmpf ogt, %127, %136 : vector<3x1xf32>
    %138 = arith.extui %137 : vector<3x1xi1> to vector<3x1xi32>
    %139 = arith.sitofp %138 : vector<3x1xi32> to vector<3x1xf32>
    %cst_40 = arith.constant 0.000000e+00 : f32
    %140 = vector.shape_cast %139 : vector<3x1xf32> to vector<3x1xf32>
    %141 = vector.broadcast %140 : vector<3x1xf32> to vector<3x16xf32>
    %142 = vector.broadcast %cst_40 : f32 to vector<3x16xf32>
    %143 = arith.select %135, %141, %142 : vector<3x16xi1>, vector<3x16xf32>
    %144 = arith.addf %123, %143 : vector<3x16xf32>
    %cst_41 = arith.constant -1.000000e+00 : f32
    %145 = vector.broadcast %cst_41 : f32 to vector<3x16xf32>
    %146 = arith.select %135, %145, %125 : vector<3x16xi1>, vector<3x16xf32>
    %cst_42 = arith.constant dense<0xFF800000> : vector<3xf32>
    %147 = vector.multi_reduction <maximumf>, %146, %cst_42 [1] : vector<3x16xf32> to vector<3xf32>
    %148 = vector.shape_cast %147 : vector<3xf32> to vector<3x1xf32>
    %149 = vector.broadcast %148 : vector<3x1xf32> to vector<3x16xf32>
    %150 = arith.cmpf oge, %146, %149 : vector<3x16xf32>
    %cst_43 = arith.constant 1.600000e+01 : f32
    %151 = vector.broadcast %cst_43 : f32 to vector<3x16xf32>
    %152 = arith.select %150, %82, %151 : vector<3x16xi1>, vector<3x16xf32>
    %cst_44 = arith.constant dense<0x7F800000> : vector<3xf32>
    %153 = vector.multi_reduction <minimumf>, %152, %cst_44 [1] : vector<3x16xf32> to vector<3xf32>
    %154 = vector.shape_cast %153 : vector<3xf32> to vector<3x1xf32>
    %155 = vector.broadcast %154 : vector<3x1xf32> to vector<3x16xf32>
    %156 = arith.cmpf oeq, %82, %155 : vector<3x16xf32>
    %cst_45 = arith.constant 0.699999988 : f32
    %157 = vector.broadcast %cst_45 : f32 to vector<3x1xf32>
    %158 = arith.cmpf ogt, %148, %157 : vector<3x1xf32>
    %159 = arith.extui %158 : vector<3x1xi1> to vector<3x1xi32>
    %160 = arith.sitofp %159 : vector<3x1xi32> to vector<3x1xf32>
    %cst_46 = arith.constant 0.000000e+00 : f32
    %161 = vector.shape_cast %160 : vector<3x1xf32> to vector<3x1xf32>
    %162 = vector.broadcast %161 : vector<3x1xf32> to vector<3x16xf32>
    %163 = vector.broadcast %cst_46 : f32 to vector<3x16xf32>
    %164 = arith.select %156, %162, %163 : vector<3x16xi1>, vector<3x16xf32>
    %165 = arith.addf %144, %164 : vector<3x16xf32>
    %c0_47 = arith.constant 0 : index
    %c0_48 = arith.constant 0 : index
    %166 = vector.load %arg1[%c0_47, %c0_48] : memref<16x32xf32, #tpu.memory_space<vmem>>, vector<16x32xf32>
    %167 = vector.extract_strided_slice %0 {offsets = [0, 0, 0], sizes = [1, 16, 32], strides = [1, 1, 1]} : vector<3x16x32xf32> to vector<1x16x32xf32>
    %168 = vector.shape_cast %167 : vector<1x16x32xf32> to vector<16x32xf32>
    %c0_49 = arith.constant 0 : index
    %c0_50 = arith.constant 0 : index
    %169 = vector.load %arg7[%c0_49, %c0_50] : memref<32x96xbf16, #tpu.memory_space<vmem>>, vector<32x96xbf16>
    %170 = arith.truncf %1 : vector<48x32xf32> to vector<48x32xbf16>
    %cst_51 = arith.constant dense<0.000000e+00> : vector<48x96xf32>
    %171 = tpu.matmul %170, %169, %cst_51 {dimension_numbers = #tpu.dot_dimension_numbers<[1], [0], [0], [1], [0, 0, 1, 1], [], []>} : vector<48x32xbf16>, vector<32x96xbf16>, vector<48x96xf32> -> vector<48x96xf32>
    %c0_52 = arith.constant 0 : index
    %c0_53 = arith.constant 0 : index
    %172 = vector.load %arg8[%c0_52, %c0_53] : memref<1x96xf32, #tpu.memory_space<vmem>>, vector<1x96xf32>
    %173 = vector.broadcast %172 : vector<1x96xf32> to vector<48x96xf32>
    %174 = arith.addf %171, %173 : vector<48x96xf32>
    %175 = vector.shape_cast %174 : vector<48x96xf32> to vector<3x16x96xf32>
    %176 = arith.truncf %166 : vector<16x32xf32> to vector<16x32xbf16>
    %cst_54 = arith.constant dense<0.000000e+00> : vector<16x96xf32>
    %177 = tpu.matmul %176, %169, %cst_54 {dimension_numbers = #tpu.dot_dimension_numbers<[1], [0], [0], [1], [0, 0, 1, 1], [], []>} : vector<16x32xbf16>, vector<32x96xbf16>, vector<16x96xf32> -> vector<16x96xf32>
    %178 = vector.extract_strided_slice %175 {offsets = [0, 0, 0], sizes = [1, 16, 32], strides = [1, 1, 1]} : vector<3x16x96xf32> to vector<1x16x32xf32>
    %179 = vector.shape_cast %178 : vector<1x16x32xf32> to vector<16x32xf32>
    %180 = vector.extract_strided_slice %177 {offsets = [0, 0], sizes = [16, 32], strides = [1, 1]} : vector<16x96xf32> to vector<16x32xf32>
    %181 = arith.addf %179, %180 : vector<16x32xf32>
    %182 = vector.extract_strided_slice %175 {offsets = [1, 0, 32], sizes = [2, 16, 32], strides = [1, 1, 1]} : vector<3x16x96xf32> to vector<2x16x32xf32>
    %183 = vector.extract_strided_slice %177 {offsets = [0, 32], sizes = [16, 32], strides = [1, 1]} : vector<16x96xf32> to vector<16x32xf32>
    %184 = vector.shape_cast %183 : vector<16x32xf32> to vector<1x16x32xf32>
    %185 = vector.broadcast %184 : vector<1x16x32xf32> to vector<2x16x32xf32>
    %186 = arith.addf %182, %185 : vector<2x16x32xf32>
    %187 = vector.extract_strided_slice %175 {offsets = [1, 0, 64], sizes = [2, 16, 32], strides = [1, 1, 1]} : vector<3x16x96xf32> to vector<2x16x32xf32>
    %188 = vector.extract_strided_slice %181 {offsets = [0, 0], sizes = [16, 16], strides = [1, 1]} : vector<16x32xf32> to vector<16x16xf32>
    %189 = vector.shape_cast %188 : vector<16x16xf32> to vector<1x16x16xf32>
    %190 = vector.shape_cast %189 : vector<1x16x16xf32> to vector<1x16x16xf32>
    %191 = vector.broadcast %190 : vector<1x16x16xf32> to vector<2x16x16xf32>
    %192 = vector.extract_strided_slice %186 {offsets = [0, 0, 0], sizes = [2, 16, 16], strides = [1, 1, 1]} : vector<2x16x32xf32> to vector<2x16x16xf32>
    %193 = vector.extract_strided_slice %187 {offsets = [0, 0, 0], sizes = [2, 16, 16], strides = [1, 1, 1]} : vector<2x16x32xf32> to vector<2x16x16xf32>
    %194 = arith.truncf %191 : vector<2x16x16xf32> to vector<2x16x16xbf16>
    %195 = arith.truncf %192 : vector<2x16x16xf32> to vector<2x16x16xbf16>
    "tpu.trace_start"() <{level = 10 : i32, message = "bad,bcd->bac"}> : () -> ()
    %cst_55 = arith.constant dense<0.000000e+00> : vector<2x16x16xf32>
    %196 = tpu.matmul %194, %195, %cst_55 {dimension_numbers = #tpu.dot_dimension_numbers<[2], [2], [1], [1], [0, 0, 0, 1, 1, 1], [0], [0]>} : vector<2x16x16xbf16>, vector<2x16x16xbf16>, vector<2x16x16xf32> -> vector<2x16x16xf32>
    "tpu.trace_stop"() : () -> ()
    %cst_56 = arith.constant 2.500000e-01 : f32
    %197 = vector.broadcast %cst_56 : f32 to vector<2x16x16xf32>
    %198 = arith.mulf %196, %197 : vector<2x16x16xf32>
    %cst_57 = arith.constant dense<0xFF800000> : vector<2x16xf32>
    %199 = vector.multi_reduction <maximumf>, %198, %cst_57 [2] : vector<2x16x16xf32> to vector<2x16xf32>
    %200 = vector.shape_cast %199 : vector<2x16xf32> to vector<2x16x1xf32>
    %201 = vector.broadcast %200 : vector<2x16x1xf32> to vector<2x16x16xf32>
    %202 = arith.subf %198, %201 : vector<2x16x16xf32>
    %203 = math.exp %202 : vector<2x16x16xf32>
    %cst_58 = arith.constant dense<0.000000e+00> : vector<2x16xf32>
    %204 = vector.multi_reduction <add>, %203, %cst_58 [2] : vector<2x16x16xf32> to vector<2x16xf32>
    %205 = vector.shape_cast %204 : vector<2x16xf32> to vector<2x16x1xf32>
    %206 = tpu.reciprocal %205 : vector<2x16x1xf32> -> vector<2x16x1xf32>
    %207 = vector.broadcast %206 : vector<2x16x1xf32> to vector<2x16x16xf32>
    %208 = arith.mulf %203, %207 : vector<2x16x16xf32>
    %209 = arith.truncf %208 : vector<2x16x16xf32> to vector<2x16x16xbf16>
    %210 = arith.truncf %193 : vector<2x16x16xf32> to vector<2x16x16xbf16>
    "tpu.trace_start"() <{level = 10 : i32, message = "bac,bcd->bad"}> : () -> ()
    %cst_59 = arith.constant dense<0.000000e+00> : vector<2x16x16xf32>
    %211 = tpu.matmul %209, %210, %cst_59 {dimension_numbers = #tpu.dot_dimension_numbers<[2], [1], [1], [2], [0, 0, 0, 1, 1, 2], [0], [0]>} : vector<2x16x16xbf16>, vector<2x16x16xbf16>, vector<2x16x16xf32> -> vector<2x16x16xf32>
    "tpu.trace_stop"() : () -> ()
    %cst_60 = arith.constant dense<0.000000e+00> : vector<16x16xf32>
    %212 = vector.multi_reduction <add>, %211, %cst_60 [0] : vector<2x16x16xf32> to vector<16x16xf32>
    %213 = vector.extract_strided_slice %181 {offsets = [0, 16], sizes = [16, 16], strides = [1, 1]} : vector<16x32xf32> to vector<16x16xf32>
    %214 = vector.shape_cast %213 : vector<16x16xf32> to vector<1x16x16xf32>
    %215 = vector.shape_cast %214 : vector<1x16x16xf32> to vector<1x16x16xf32>
    %216 = vector.broadcast %215 : vector<1x16x16xf32> to vector<2x16x16xf32>
    %217 = vector.extract_strided_slice %186 {offsets = [0, 0, 16], sizes = [2, 16, 16], strides = [1, 1, 1]} : vector<2x16x32xf32> to vector<2x16x16xf32>
    %218 = vector.extract_strided_slice %187 {offsets = [0, 0, 16], sizes = [2, 16, 16], strides = [1, 1, 1]} : vector<2x16x32xf32> to vector<2x16x16xf32>
    %219 = arith.truncf %216 : vector<2x16x16xf32> to vector<2x16x16xbf16>
    %220 = arith.truncf %217 : vector<2x16x16xf32> to vector<2x16x16xbf16>
    "tpu.trace_start"() <{level = 10 : i32, message = "bad,bcd->bac"}> : () -> ()
    %cst_61 = arith.constant dense<0.000000e+00> : vector<2x16x16xf32>
    %221 = tpu.matmul %219, %220, %cst_61 {dimension_numbers = #tpu.dot_dimension_numbers<[2], [2], [1], [1], [0, 0, 0, 1, 1, 1], [0], [0]>} : vector<2x16x16xbf16>, vector<2x16x16xbf16>, vector<2x16x16xf32> -> vector<2x16x16xf32>
    "tpu.trace_stop"() : () -> ()
    %cst_62 = arith.constant 2.500000e-01 : f32
    %222 = vector.broadcast %cst_62 : f32 to vector<2x16x16xf32>
    %223 = arith.mulf %221, %222 : vector<2x16x16xf32>
    %cst_63 = arith.constant dense<0xFF800000> : vector<2x16xf32>
    %224 = vector.multi_reduction <maximumf>, %223, %cst_63 [2] : vector<2x16x16xf32> to vector<2x16xf32>
    %225 = vector.shape_cast %224 : vector<2x16xf32> to vector<2x16x1xf32>
    %226 = vector.broadcast %225 : vector<2x16x1xf32> to vector<2x16x16xf32>
    %227 = arith.subf %223, %226 : vector<2x16x16xf32>
    %228 = math.exp %227 : vector<2x16x16xf32>
    %cst_64 = arith.constant dense<0.000000e+00> : vector<2x16xf32>
    %229 = vector.multi_reduction <add>, %228, %cst_64 [2] : vector<2x16x16xf32> to vector<2x16xf32>
    %230 = vector.shape_cast %229 : vector<2x16xf32> to vector<2x16x1xf32>
    %231 = tpu.reciprocal %230 : vector<2x16x1xf32> -> vector<2x16x1xf32>
    %232 = vector.broadcast %231 : vector<2x16x1xf32> to vector<2x16x16xf32>
    %233 = arith.mulf %228, %232 : vector<2x16x16xf32>
    %234 = arith.truncf %233 : vector<2x16x16xf32> to vector<2x16x16xbf16>
    %235 = arith.truncf %218 : vector<2x16x16xf32> to vector<2x16x16xbf16>
    "tpu.trace_start"() <{level = 10 : i32, message = "bac,bcd->bad"}> : () -> ()
    %cst_65 = arith.constant dense<0.000000e+00> : vector<2x16x16xf32>
    %236 = tpu.matmul %234, %235, %cst_65 {dimension_numbers = #tpu.dot_dimension_numbers<[2], [1], [1], [2], [0, 0, 0, 1, 1, 2], [0], [0]>} : vector<2x16x16xbf16>, vector<2x16x16xbf16>, vector<2x16x16xf32> -> vector<2x16x16xf32>
    "tpu.trace_stop"() : () -> ()
    %cst_66 = arith.constant dense<0.000000e+00> : vector<16x16xf32>
    %237 = vector.multi_reduction <add>, %236, %cst_66 [0] : vector<2x16x16xf32> to vector<16x16xf32>
    %238 = tpu.concatenate %212, %237 in 1 : vector<16x16xf32>, vector<16x16xf32> -> vector<16x32xf32>
    %c0_67 = arith.constant 0 : index
    %c0_68 = arith.constant 0 : index
    %239 = vector.load %arg9[%c0_67, %c0_68] : memref<32x32xbf16, #tpu.memory_space<vmem>>, vector<32x32xbf16>
    %240 = arith.truncf %238 : vector<16x32xf32> to vector<16x32xbf16>
    %cst_69 = arith.constant dense<0.000000e+00> : vector<16x32xf32>
    %241 = tpu.matmul %240, %239, %cst_69 {dimension_numbers = #tpu.dot_dimension_numbers<[1], [0], [0], [1], [0, 0, 1, 1], [], []>} : vector<16x32xbf16>, vector<32x32xbf16>, vector<16x32xf32> -> vector<16x32xf32>
    %c0_70 = arith.constant 0 : index
    %c0_71 = arith.constant 0 : index
    %242 = vector.load %arg10[%c0_70, %c0_71] : memref<1x32xf32, #tpu.memory_space<vmem>>, vector<1x32xf32>
    %243 = vector.broadcast %242 : vector<1x32xf32> to vector<16x32xf32>
    %244 = arith.addf %168, %243 : vector<16x32xf32>
    %cst_72 = arith.constant 2.000000e+00 : f32
    %245 = vector.broadcast %cst_72 : f32 to vector<16x32xf32>
    %246 = arith.mulf %245, %244 : vector<16x32xf32>
    %247 = arith.addf %246, %241 : vector<16x32xf32>
    %c0_73 = arith.constant 0 : index
    %c0_74 = arith.constant 0 : index
    %c0_75 = arith.constant 0 : index
    %248 = vector.load %arg2[%c0_73, %c0_74, %c0_75] : memref<8x3x16xf32, #tpu.memory_space<vmem>>, vector<1x3x16xf32>
    %249 = vector.shape_cast %248 : vector<1x3x16xf32> to vector<3x16xf32>
    %c1 = arith.constant 1 : index
    %c0_76 = arith.constant 0 : index
    %c0_77 = arith.constant 0 : index
    %250 = vector.load %arg2[%c1, %c0_76, %c0_77] : memref<8x3x16xf32, #tpu.memory_space<vmem>>, vector<1x3x16xf32>
    %251 = vector.shape_cast %250 : vector<1x3x16xf32> to vector<3x16xf32>
    %c2 = arith.constant 2 : index
    %c0_78 = arith.constant 0 : index
    %c0_79 = arith.constant 0 : index
    %252 = vector.load %arg2[%c2, %c0_78, %c0_79] : memref<8x3x16xf32, #tpu.memory_space<vmem>>, vector<1x3x16xf32>
    %253 = vector.shape_cast %252 : vector<1x3x16xf32> to vector<3x16xf32>
    %c3 = arith.constant 3 : index
    %c0_80 = arith.constant 0 : index
    %c0_81 = arith.constant 0 : index
    %254 = vector.load %arg2[%c3, %c0_80, %c0_81] : memref<8x3x16xf32, #tpu.memory_space<vmem>>, vector<1x3x16xf32>
    %255 = vector.shape_cast %254 : vector<1x3x16xf32> to vector<3x16xf32>
    %256 = math.exp %255 : vector<3x16xf32>
    %c4 = arith.constant 4 : index
    %c0_82 = arith.constant 0 : index
    %c0_83 = arith.constant 0 : index
    %257 = vector.load %arg2[%c4, %c0_82, %c0_83] : memref<8x3x16xf32, #tpu.memory_space<vmem>>, vector<1x3x16xf32>
    %258 = vector.shape_cast %257 : vector<1x3x16xf32> to vector<3x16xf32>
    %259 = math.exp %258 : vector<3x16xf32>
    %c5 = arith.constant 5 : index
    %c0_84 = arith.constant 0 : index
    %c0_85 = arith.constant 0 : index
    %260 = vector.load %arg2[%c5, %c0_84, %c0_85] : memref<8x3x16xf32, #tpu.memory_space<vmem>>, vector<1x3x16xf32>
    %261 = vector.shape_cast %260 : vector<1x3x16xf32> to vector<3x16xf32>
    %262 = math.exp %261 : vector<3x16xf32>
    %c6 = arith.constant 6 : index
    %c0_86 = arith.constant 0 : index
    %c0_87 = arith.constant 0 : index
    %263 = vector.load %arg2[%c6, %c0_86, %c0_87] : memref<8x3x16xf32, #tpu.memory_space<vmem>>, vector<1x3x16xf32>
    %264 = vector.shape_cast %263 : vector<1x3x16xf32> to vector<3x16xf32>
    %265 = math.absf %264 : vector<3x16xf32>
    %c7 = arith.constant 7 : index
    %c0_88 = arith.constant 0 : index
    %c0_89 = arith.constant 0 : index
    %266 = vector.load %arg2[%c7, %c0_88, %c0_89] : memref<8x3x16xf32, #tpu.memory_space<vmem>>, vector<1x3x16xf32>
    %267 = vector.shape_cast %266 : vector<1x3x16xf32> to vector<3x16xf32>
    %268 = math.absf %267 : vector<3x16xf32>
    %269 = arith.mulf %268, %256 : vector<3x16xf32>
    %270 = arith.mulf %265, %259 : vector<3x16xf32>
    %271 = arith.addf %269, %270 : vector<3x16xf32>
    %cst_90 = arith.constant 5.000000e-01 : f32
    %272 = vector.broadcast %cst_90 : f32 to vector<3x16xf32>
    %273 = arith.mulf %272, %271 : vector<3x16xf32>
    %274 = arith.mulf %265, %256 : vector<3x16xf32>
    %275 = arith.mulf %268, %259 : vector<3x16xf32>
    %276 = arith.addf %274, %275 : vector<3x16xf32>
    %cst_91 = arith.constant 5.000000e-01 : f32
    %277 = vector.broadcast %cst_91 : f32 to vector<3x16xf32>
    %278 = arith.mulf %277, %276 : vector<3x16xf32>
    %cst_92 = arith.constant 5.000000e-01 : f32
    %279 = vector.broadcast %cst_92 : f32 to vector<3x16xf32>
    %280 = arith.mulf %279, %262 : vector<3x16xf32>
    %c0_93 = arith.constant 0 : index
    %c0_94 = arith.constant 0 : index
    %c0_95 = arith.constant 0 : index
    %281 = vector.load %arg3[%c0_93, %c0_94, %c0_95] : memref<3x3x48xf32, #tpu.memory_space<vmem>>, vector<1x3x48xf32>
    %282 = vector.shape_cast %281 : vector<1x3x48xf32> to vector<3x48xf32>
    %283 = arith.subf %249, %273 : vector<3x16xf32>
    %284 = arith.addf %249, %273 : vector<3x16xf32>
    %285 = vector.shape_cast %282 : vector<3x48xf32> to vector<3x1x48xf32>
    %286 = vector.shape_cast %283 : vector<3x16xf32> to vector<3x16x1xf32>
    %287 = vector.broadcast %285 : vector<3x1x48xf32> to vector<3x16x48xf32>
    %288 = vector.broadcast %286 : vector<3x16x1xf32> to vector<3x16x48xf32>
    %289 = arith.cmpf oge, %287, %288 : vector<3x16x48xf32>
    %290 = vector.shape_cast %284 : vector<3x16xf32> to vector<3x16x1xf32>
    %291 = vector.broadcast %285 : vector<3x1x48xf32> to vector<3x16x48xf32>
    %292 = vector.broadcast %290 : vector<3x16x1xf32> to vector<3x16x48xf32>
    %293 = arith.cmpf ole, %291, %292 : vector<3x16x48xf32>
    %294 = arith.andi %289, %293 : vector<3x16x48xi1>
    %c1_96 = arith.constant 1 : index
    %c0_97 = arith.constant 0 : index
    %c0_98 = arith.constant 0 : index
    %295 = vector.load %arg3[%c1_96, %c0_97, %c0_98] : memref<3x3x48xf32, #tpu.memory_space<vmem>>, vector<1x3x48xf32>
    %296 = vector.shape_cast %295 : vector<1x3x48xf32> to vector<3x48xf32>
    %297 = arith.subf %251, %278 : vector<3x16xf32>
    %298 = arith.addf %251, %278 : vector<3x16xf32>
    %299 = vector.shape_cast %296 : vector<3x48xf32> to vector<3x1x48xf32>
    %300 = vector.shape_cast %297 : vector<3x16xf32> to vector<3x16x1xf32>
    %301 = vector.broadcast %299 : vector<3x1x48xf32> to vector<3x16x48xf32>
    %302 = vector.broadcast %300 : vector<3x16x1xf32> to vector<3x16x48xf32>
    %303 = arith.cmpf oge, %301, %302 : vector<3x16x48xf32>
    %304 = vector.shape_cast %298 : vector<3x16xf32> to vector<3x16x1xf32>
    %305 = vector.broadcast %299 : vector<3x1x48xf32> to vector<3x16x48xf32>
    %306 = vector.broadcast %304 : vector<3x16x1xf32> to vector<3x16x48xf32>
    %307 = arith.cmpf ole, %305, %306 : vector<3x16x48xf32>
    %308 = arith.andi %303, %307 : vector<3x16x48xi1>
    %309 = arith.andi %294, %308 : vector<3x16x48xi1>
    %c2_99 = arith.constant 2 : index
    %c0_100 = arith.constant 0 : index
    %c0_101 = arith.constant 0 : index
    %310 = vector.load %arg3[%c2_99, %c0_100, %c0_101] : memref<3x3x48xf32, #tpu.memory_space<vmem>>, vector<1x3x48xf32>
    %311 = vector.shape_cast %310 : vector<1x3x48xf32> to vector<3x48xf32>
    %312 = arith.subf %253, %280 : vector<3x16xf32>
    %313 = arith.addf %253, %280 : vector<3x16xf32>
    %314 = vector.shape_cast %311 : vector<3x48xf32> to vector<3x1x48xf32>
    %315 = vector.shape_cast %312 : vector<3x16xf32> to vector<3x16x1xf32>
    %316 = vector.broadcast %314 : vector<3x1x48xf32> to vector<3x16x48xf32>
    %317 = vector.broadcast %315 : vector<3x16x1xf32> to vector<3x16x48xf32>
    %318 = arith.cmpf oge, %316, %317 : vector<3x16x48xf32>
    %319 = vector.shape_cast %313 : vector<3x16xf32> to vector<3x16x1xf32>
    %320 = vector.broadcast %314 : vector<3x1x48xf32> to vector<3x16x48xf32>
    %321 = vector.broadcast %319 : vector<3x16x1xf32> to vector<3x16x48xf32>
    %322 = arith.cmpf ole, %320, %321 : vector<3x16x48xf32>
    %323 = arith.andi %318, %322 : vector<3x16x48xi1>
    %324 = arith.andi %309, %323 : vector<3x16x48xi1>
    %325 = tpu.iota {dimensions = array<i32: 1>} : vector<3x48xi32>
    %326 = tpu.iota {dimensions = array<i32: 0>} : vector<3x48xi32>
    %c16_i32 = arith.constant 16 : i32
    %327 = vector.broadcast %c16_i32 : i32 to vector<3x48xi32>
    %328 = arith.muli %326, %327 : vector<3x48xi32>
    %329 = arith.cmpi sge, %325, %328 : vector<3x48xi32>
    %c1_i32 = arith.constant 1 : i32
    %330 = vector.broadcast %c1_i32 : i32 to vector<3x48xi32>
    %331 = arith.addi %326, %330 : vector<3x48xi32>
    %c16_i32_102 = arith.constant 16 : i32
    %332 = vector.broadcast %c16_i32_102 : i32 to vector<3x48xi32>
    %333 = arith.muli %331, %332 : vector<3x48xi32>
    %334 = arith.cmpi slt, %325, %333 : vector<3x48xi32>
    %335 = arith.andi %329, %334 : vector<3x48xi1>
    %cst_103 = arith.constant 0.000000e+00 : f32
    %cst_104 = arith.constant 1.000000e+00 : f32
    %336 = vector.broadcast %cst_103 : f32 to vector<3x48xf32>
    %337 = vector.broadcast %cst_104 : f32 to vector<3x48xf32>
    %338 = arith.select %335, %336, %337 : vector<3x48xi1>, vector<3x48xf32>
    %cst_105 = arith.constant 1.000000e+00 : f32
    %cst_106 = arith.constant 0.000000e+00 : f32
    %339 = vector.broadcast %cst_105 : f32 to vector<3x16x48xf32>
    %340 = vector.broadcast %cst_106 : f32 to vector<3x16x48xf32>
    %341 = arith.select %324, %339, %340 : vector<3x16x48xi1>, vector<3x16x48xf32>
    %342 = vector.shape_cast %338 : vector<3x48xf32> to vector<3x1x48xf32>
    %343 = vector.broadcast %342 : vector<3x1x48xf32> to vector<3x16x48xf32>
    %344 = arith.mulf %341, %343 : vector<3x16x48xf32>
    %345 = vector.shape_cast %165 : vector<3x16xf32> to vector<3x16x1xf32>
    %346 = vector.broadcast %345 : vector<3x16x1xf32> to vector<3x16x32xf32>
    %347 = arith.mulf %0, %346 : vector<3x16x32xf32>
    %348 = vector.shape_cast %344 : vector<3x16x48xf32> to vector<48x48xf32>
    %349 = vector.shape_cast %347 : vector<3x16x32xf32> to vector<48x32xf32>
    %cst_107 = arith.constant dense<0.000000e+00> : vector<48x32xf32>
    %350 = tpu.matmul %348, %349, %cst_107 {dimension_numbers = #tpu.dot_dimension_numbers<[1], [0], [0], [1], [0, 0, 1, 1], [], []>} : vector<48x48xf32>, vector<48x32xf32>, vector<48x32xf32> -> vector<48x32xf32>
    %351 = vector.shape_cast %247 : vector<16x32xf32> to vector<1x16x32xf32>
    %352 = vector.shape_cast %350 : vector<48x32xf32> to vector<3x16x32xf32>
    %353 = vector.broadcast %351 : vector<1x16x32xf32> to vector<3x16x32xf32>
    %354 = arith.addf %353, %352 : vector<3x16x32xf32>
    %c0_108 = arith.constant 0 : index
    %c0_109 = arith.constant 0 : index
    %c0_110 = arith.constant 0 : index
    %355 = vector.load %arg11[%c0_108, %c0_109, %c0_110] : memref<3x16x32xf32, #tpu.memory_space<vmem>>, vector<3x16x32xf32>
    tpu.vector_store %arg11[%c0_108, %c0_109, %c0_110], %354 {strides = array<i32>} : memref<3x16x32xf32, #tpu.memory_space<vmem>>, vector<3x16x32xf32>,
    return
  }
}

</mosaic_0001>

<llo_original>
// kernel: point_encoder_v6_forward.1
$region0: #{point_encoder_v6_forward.1}
  #allocation0 [shape = 'u32[]', space=smem, size = 0x4, offset = 0x4, fixed_abs, tag = 'smem constant byte address 0x4 - core index']
  #allocation1 [shape = 'u32[72,128]{1,0:T(1,128)}', space=vmem, size = 0x9000, scoped, tag = 'internal scratch']
  %s0 = inlined_call_operand.vmem [shape: f32[3,16,32], index: 0, kind: input, shape index: {}]
  %s1 = inlined_call_operand.vmem [shape: f32[16,32], index: 1, kind: input, shape index: {}]
  %s2 = inlined_call_operand.vmem [shape: f32[8,3,16], index: 2, kind: input, shape index: {}]
  %s3 = inlined_call_operand.vmem [shape: f32[3,3,48], index: 3, kind: input, shape index: {}]
  %s4 = inlined_call_operand.vmem [shape: bf16[32,32], index: 4, kind: input, shape index: {}]
  %s5 = inlined_call_operand.vmem [shape: bf16[32,32], index: 5, kind: input, shape index: {}]
  %s6 = inlined_call_operand.vmem [shape: f32[8,32], index: 6, kind: input, shape index: {}]
  %s7 = inlined_call_operand.vmem [shape: bf16[32,96], index: 7, kind: input, shape index: {}]
  %s8 = inlined_call_operand.vmem [shape: f32[1,96], index: 8, kind: input, shape index: {}]
  %s9 = inlined_call_operand.vmem [shape: bf16[32,32], index: 9, kind: input, shape index: {}]
  %s10 = inlined_call_operand.vmem [shape: f32[1,32], index: 10, kind: input, shape index: {}]
  %s11 = inlined_call_operand.hbm [shape: f32[3,16,32], index: 11, kind: output, shape index: {}]
  %s12 = sld [smem:[#allocation0]]
  $region54: #{point_encoder_v6_forward.1} parent=0
    _
  %s14 = ssub.s32 1, %s12
  %s15 = scalar_select 0, %s14, %s12
  $region1: #{point_encoder_v6_forward.1} parent=0
    #allocation2 [shape = 'u8[24576]{0}', space=vmem, size = 0x6000, scoped, tag = 'output window, operand 0, single buffered']
    #allocation3 [shape = 's32[1]{0}', space=sflag, size = 0x4, scoped, tag = 'scoped memory for point_encoder_v6_forward.1']
    %16 = vsyncpa [#allocation3], 0
    // Predicated region
    $region2: #{point_encoder_v6_forward.1} parent=1 // pred_check
      _
    $region3: #{point_encoder_v6_forward.1} parent=1 // pred_check_branch
      %18 = sbr.rel (0) target = $region5
    $region4: #{point_encoder_v6_forward.1} parent=1 // pred_region
      _
    $region5: #{point_encoder_v6_forward.1} parent=1 // pred_fallthru
      _
    // Predicated region
    $region6: #{point_encoder_v6_forward.1} parent=1 // pred_check
      _
    $region7: #{point_encoder_v6_forward.1} parent=1 // pred_check_branch
      %20 = sbr.rel (0) target = $region9
    $region8: #{point_encoder_v6_forward.1} parent=1 // pred_region
      _
    $region9: #{point_encoder_v6_forward.1} parent=1 // pred_fallthru
      _
    // Predicated region
    $region10: #{point_encoder_v6_forward.1} parent=1 // pred_check
      _
    $region11: #{point_encoder_v6_forward.1} parent=1 // pred_check_branch
      %22 = sbr.rel (0) target = $region13
    $region12: #{point_encoder_v6_forward.1} parent=1 // pred_region
      _
    $region13: #{point_encoder_v6_forward.1} parent=1 // pred_fallthru
      _
    // Predicated region
    $region14: #{point_encoder_v6_forward.1} parent=1 // pred_check
      _
    $region15: #{point_encoder_v6_forward.1} parent=1 // pred_check_branch
      %24 = sbr.rel (0) target = $region17
    $region16: #{point_encoder_v6_forward.1} parent=1 // pred_region
      _
    $region17: #{point_encoder_v6_forward.1} parent=1 // pred_fallthru
      _
    // Predicated region
    $region18: #{point_encoder_v6_forward.1} parent=1 // pred_check
      _
    $region19: #{point_encoder_v6_forward.1} parent=1 // pred_check_branch
      %26 = sbr.rel (0) target = $region21
    $region20: #{point_encoder_v6_forward.1} parent=1 // pred_region
      _
    $region21: #{point_encoder_v6_forward.1} parent=1 // pred_fallthru
      _
    // Predicated region
    $region22: #{point_encoder_v6_forward.1} parent=1 // pred_check
      _
    $region23: #{point_encoder_v6_forward.1} parent=1 // pred_check_branch
      %28 = sbr.rel (0) target = $region25
    $region24: #{point_encoder_v6_forward.1} parent=1 // pred_region
      _
    $region25: #{point_encoder_v6_forward.1} parent=1 // pred_fallthru
      _
    // Predicated region
    $region26: #{point_encoder_v6_forward.1} parent=1 // pred_check
      _
    $region27: #{point_encoder_v6_forward.1} parent=1 // pred_check_branch
      %30 = sbr.rel (0) target = $region29
    $region28: #{point_encoder_v6_forward.1} parent=1 // pred_region
      _
    $region29: #{point_encoder_v6_forward.1} parent=1 // pred_fallthru
      _
    // Predicated region
    $region30: #{point_encoder_v6_forward.1} parent=1 // pred_check
      _
    $region31: #{point_encoder_v6_forward.1} parent=1 // pred_check_branch
      %32 = sbr.rel (0) target = $region33
    $region32: #{point_encoder_v6_forward.1} parent=1 // pred_region
      _
    $region33: #{point_encoder_v6_forward.1} parent=1 // pred_fallthru
      _
    // Predicated region
    $region34: #{point_encoder_v6_forward.1} parent=1 // pred_check
      _
    $region35: #{point_encoder_v6_forward.1} parent=1 // pred_check_branch
      %34 = sbr.rel (0) target = $region37
    $region36: #{point_encoder_v6_forward.1} parent=1 // pred_region
      _
    $region37: #{point_encoder_v6_forward.1} parent=1 // pred_fallthru
      _
    // Predicated region
    $region38: #{point_encoder_v6_forward.1} parent=1 // pred_check
      _
    $region39: #{point_encoder_v6_forward.1} parent=1 // pred_check_branch
      %36 = sbr.rel (0) target = $region41
    $region40: #{point_encoder_v6_forward.1} parent=1 // pred_region
      _
    $region41: #{point_encoder_v6_forward.1} parent=1 // pred_fallthru
      _
    // Predicated region
    $region42: #{point_encoder_v6_forward.1} parent=1 // pred_check
      _
    $region43: #{point_encoder_v6_forward.1} parent=1 // pred_check_branch
      %38 = sbr.rel (0) target = $region45
    $region44: #{point_encoder_v6_forward.1} parent=1 // pred_region
      _
    $region45: #{point_encoder_v6_forward.1} parent=1 // pred_fallthru
      _
    %v40 = vld [vmem:[%s0] sm:$0xff]
    %v41 = vld [vmem:[%s0 + $0x8] sm:$0xff]
    %v42 = vld [vmem:[%s0 + $0x10] sm:$0xff]
    %v43 = vld [vmem:[%s0 + $0x18] sm:$0xff]
    %v44 = vld [vmem:[%s0 + $0x20] sm:$0xff]
    %v45 = vld [vmem:[%s0 + $0x28] sm:$0xff]
    %v46 = vld [vmem:[%s6] sm:$0xff]
    %v47 = vld [vmem:[%s4] sm:$0xf]
    %v48 = vld [vmem:[%s4 + $0x4] sm:$0xf]
    %v49 = vld [vmem:[%s4 + $0x8] sm:$0xf]
    %v50 = vld [vmem:[%s4 + $0xc] sm:$0xf]
    %v51 = vpack.c.bf16 %v41, %v40
    %v52 = vpack.c.bf16 %v43, %v42
    %v53 = vpack.c.bf16 %v45, %v44
    %v54 = vperm.slane %v46, 0
    %v59 = vunpack.c.l.b16 %v47
    %v60 = vunpack.c.l.b16 %v48
    %v61 = vunpack.c.l.b16 %v49
    %v62 = vunpack.c.l.b16 %v50
    %v63 = vpack.c.b16 %v60, %v59
    %v64 = vpack.c.b16 %v62, %v61
    %vm67 = vcmask 261120
    %v69 = vsel %vm67, %v51, 0
    %v72 = vsel %vm67, %v52, 0
    %v75 = vsel %vm67, %v53, 0
    %77 = vmatpush.bf16.msra.mxu0 0
    %78 = vmatpush.bf16.msra.mxu0 0
    %79 = vmatpush.bf16.msra.mxu0 0
    %80 = vmatpush.bf16.msra.mxu0 0
    %81 = vmatpush.bf16.msra.mxu0 0
    %82 = vmatpush.bf16.msra.mxu0 0
    %83 = vmatpush.bf16.msra.mxu0 %v64
    %84 = vmatpush.bf16.msra.mxu0 %v63
    %85 = vmatmul.bf16.gmra.mxu0 %v69
    %v86 = vpop.f32.mrf.mxu0
    %v87 = vadd.f32 %v54, %v86
    %v88 = vpop.f32.mrf.mxu0
    %v89 = vadd.f32 %v54, %v88
    %90 = vmatmul.bf16.gmra.mxu0 %v72
    %v91 = vpop.f32.mrf.mxu0
    %v92 = vadd.f32 %v54, %v91
    %v93 = vpop.f32.mrf.mxu0
    %v94 = vadd.f32 %v54, %v93
    %95 = vmatmul.bf16.gmra.mxu0 %v75
    %v96 = vpop.f32.mrf.mxu0
    %v97 = vadd.f32 %v54, %v96
    %v98 = vpop.f32.mrf.mxu0
    %v99 = vadd.f32 %v54, %v98
    %100 = vdwg.mxu0
    %v101 = vmax.f32 %v87, 0.0
    %v102 = vmax.f32 %v89, 0.0
    %v103 = vmax.f32 %v92, 0.0
    %v104 = vmax.f32 %v94, 0.0
    %v105 = vmax.f32 %v97, 0.0
    %v106 = vmax.f32 %v99, 0.0
    %v107 = vsel %vm67, %v101, 0.0
    %108 = vadd.xlane.f32.xlu0 %v107
    %v109 = vpop.xlane.xlu0 %108
    %v110 = vsel %vm67, %v102, 0.0
    %111 = vadd.xlane.f32.xlu0 %v110
    %v112 = vpop.xlane.xlu0 %111
    %v113 = vsel %vm67, %v103, 0.0
    %114 = vadd.xlane.f32.xlu0 %v113
    %v115 = vpop.xlane.xlu0 %114
    %v116 = vsel %vm67, %v104, 0.0
    %117 = vadd.xlane.f32.xlu0 %v116
    %v118 = vpop.xlane.xlu0 %117
    %v119 = vsel %vm67, %v105, 0.0
    %120 = vadd.xlane.f32.xlu0 %v119
    %v121 = vpop.xlane.xlu0 %120
    %v122 = vsel %vm67, %v106, 0.0
    %123 = vadd.xlane.f32.xlu0 %v122
    %v124 = vpop.xlane.xlu0 %123
    %v125 = vrcp.pop 32.0
    %v126 = vmul.f32 32.0, %v125
    %v127 = vsub.f32 1.0, %v126
    %v128 = vmul.f32 %v125, %v127
    %v129 = vadd.f32 %v125, %v128
    %vm130 = vweird.f32 %v125
    %v131 = vsel %vm130, %v125, %v129
    %v132 = vmul.f32 %v109, %v131
    %v133 = vmul.f32 %v112, %v131
    %v134 = vmul.f32 %v115, %v131
    %v135 = vmul.f32 %v118, %v131
    %v136 = vmul.f32 %v121, %v131
    %v137 = vmul.f32 %v124, %v131
    %v138 = vsub.f32 %v101, %v132
    %v139 = vsub.f32 %v102, %v133
    %v140 = vsub.f32 %v103, %v134
    %v141 = vsub.f32 %v104, %v135
    %v142 = vsub.f32 %v105, %v136
    %v143 = vsub.f32 %v106, %v137
    %v144 = vmul.f32 %v138, %v138
    %v145 = vmul.f32 %v139, %v139
    %v146 = vmul.f32 %v140, %v140
    %v147 = vmul.f32 %v141, %v141
    %v148 = vmul.f32 %v142, %v142
    %v149 = vmul.f32 %v143, %v143
    %v150 = vsel %vm67, %v144, 0.0
    %151 = vadd.xlane.f32.xlu0 %v150
    %v152 = vpop.xlane.xlu0 %151
    %v153 = vsel %vm67, %v145, 0.0
    %154 = vadd.xlane.f32.xlu0 %v153
    %v155 = vpop.xlane.xlu0 %154
    %v156 = vsel %vm67, %v146, 0.0
    %157 = vadd.xlane.f32.xlu0 %v156
    %v158 = vpop.xlane.xlu0 %157
    %v159 = vsel %vm67, %v147, 0.0
    %160 = vadd.xlane.f32.xlu0 %v159
    %v161 = vpop.xlane.xlu0 %160
    %v162 = vsel %vm67, %v148, 0.0
    %163 = vadd.xlane.f32.xlu0 %v162
    %v164 = vpop.xlane.xlu0 %163
    %v165 = vsel %vm67, %v149, 0.0
    %166 = vadd.xlane.f32.xlu0 %v165
    %v167 = vpop.xlane.xlu0 %166
    %v168 = vmul.f32 %v152, %v131
    %v169 = vmul.f32 %v155, %v131
    %v170 = vmul.f32 %v158, %v131
    %v171 = vmul.f32 %v161, %v131
    %v172 = vmul.f32 %v164, %v131
    %v173 = vmul.f32 %v167, %v131
    %v174 = vadd.f32 %v168, 1e-05
    %v175 = vadd.f32 %v169, 1e-05
    %v176 = vadd.f32 %v170, 1e-05
    %v177 = vadd.f32 %v171, 1e-05
    %v178 = vadd.f32 %v172, 1e-05
    %v179 = vadd.f32 %v173, 1e-05
    %v180 = vrsqrt.pop %v174
    %v181 = vmul.f32 %v180, %v174
    %v182 = vmul.f32 %v181, %v180
    %v183 = vmul.f32 0.5, %v182
    %v184 = vsub.f32 1.5, %v183
    %v185 = vmul.f32 %v180, %v184
    %vm186 = vweird.f32 %v174
    %vm187 = vweird.f32 %v180
    %vm188 = vmor %vm186, %vm187
    %v189 = vsel %vm188, %v180, %v185
    %v190 = vrsqrt.pop %v175
    %v191 = vmul.f32 %v190, %v175
    %v192 = vmul.f32 %v191, %v190
    %v193 = vmul.f32 0.5, %v192
    %v194 = vsub.f32 1.5, %v193
    %v195 = vmul.f32 %v190, %v194
    %vm196 = vweird.f32 %v175
    %vm197 = vweird.f32 %v190
    %vm198 = vmor %vm196, %vm197
    %v199 = vsel %vm198, %v190, %v195
    %v200 = vrsqrt.pop %v176
    %v201 = vmul.f32 %v200, %v176
    %v202 = vmul.f32 %v201, %v200
    %v203 = vmul.f32 0.5, %v202
    %v204 = vsub.f32 1.5, %v203
    %v205 = vmul.f32 %v200, %v204
    %vm206 = vweird.f32 %v176
    %vm207 = vweird.f32 %v200
    %vm208 = vmor %vm206, %vm207
    %v209 = vsel %vm208, %v200, %v205
    %v210 = vrsqrt.pop %v177
    %v211 = vmul.f32 %v210, %v177
    %v212 = vmul.f32 %v211, %v210
    %v213 = vmul.f32 0.5, %v212
    %v214 = vsub.f32 1.5, %v213
    %v215 = vmul.f32 %v210, %v214
    %vm216 = vweird.f32 %v177
    %vm217 = vweird.f32 %v210
    %vm218 = vmor %vm216, %vm217
    %v219 = vsel %vm218, %v210, %v215
    %v220 = vrsqrt.pop %v178
    %v221 = vmul.f32 %v220, %v178
    %v222 = vmul.f32 %v221, %v220
    %v223 = vmul.f32 0.5, %v222
    %v224 = vsub.f32 1.5, %v223
    %v225 = vmul.f32 %v220, %v224
    %vm226 = vweird.f32 %v178
    %vm227 = vweird.f32 %v220
    %vm228 = vmor %vm226, %vm227
    %v229 = vsel %vm228, %v220, %v225
    %v230 = vrsqrt.pop %v179
    %v231 = vmul.f32 %v230, %v179
    %v232 = vmul.f32 %v231, %v230
    %v233 = vmul.f32 0.5, %v232
    %v234 = vsub.f32 1.5, %v233
    %v235 = vmul.f32 %v230, %v234
    %vm236 = vweird.f32 %v179
    %vm237 = vweird.f32 %v230
    %vm238 = vmor %vm236, %vm237
    %v239 = vsel %vm238, %v230, %v235
    %v240 = vmul.f32 %v138, %v189
    %v241 = vmul.f32 %v139, %v199
    %v242 = vmul.f32 %v140, %v209
    %v243 = vmul.f32 %v141, %v219
    %v244 = vmul.f32 %v142, %v229
    %v245 = vmul.f32 %v143, %v239
    %v246 = vperm.slane %v46, 1
    %v247 = vmul.f32 %v240, %v246
    %v248 = vmul.f32 %v241, %v246
    %v249 = vmul.f32 %v242, %v246
    %v250 = vmul.f32 %v243, %v246
    %v251 = vmul.f32 %v244, %v246
    %v252 = vmul.f32 %v245, %v246
    %v253 = vperm.slane %v46, 2
    %v254 = vadd.f32 %v247, %v253
    %v255 = vadd.f32 %v248, %v253
    %v256 = vadd.f32 %v249, %v253
    %v257 = vadd.f32 %v250, %v253
    %v258 = vadd.f32 %v251, %v253
    %v259 = vadd.f32 %v252, %v253
    %v260 = vld [vmem:[%s5] sm:$0xf]
    %v261 = vld [vmem:[%s5 + $0x4] sm:$0xf]
    %v262 = vld [vmem:[%s5 + $0x8] sm:$0xf]
    %v263 = vld [vmem:[%s5 + $0xc] sm:$0xf]
    %v264 = vpack.c.bf16 %v255, %v254
    %v265 = vpack.c.bf16 %v257, %v256
    %v266 = vpack.c.bf16 %v259, %v258
    %v267 = vperm.slane %v46, 3
    %v272 = vunpack.c.l.b16 %v260
    %v273 = vunpack.c.l.b16 %v261
    %v274 = vunpack.c.l.b16 %v262
    %v275 = vunpack.c.l.b16 %v263
    %v276 = vpack.c.b16 %v273, %v272
    %v277 = vpack.c.b16 %v275, %v274
    %v281 = vsel %vm67, %v264, 0
    %v284 = vsel %vm67, %v265, 0
    %v287 = vsel %vm67, %v266, 0
    %289 = vmatpush.bf16.msra.mxu0 0
    %290 = vmatpush.bf16.msra.mxu0 0
    %291 = vmatpush.bf16.msra.mxu0 0
    %292 = vmatpush.bf16.msra.mxu0 0
    %293 = vmatpush.bf16.msra.mxu0 0
    %294 = vmatpush.bf16.msra.mxu0 0
    %295 = vmatpush.bf16.msra.mxu0 %v277
    %296 = vmatpush.bf16.msra.mxu0 %v276
    %297 = vmatmul.bf16.gmra.mxu0 %v281
    %v298 = vpop.f32.mrf.mxu0
    %v299 = vadd.f32 %v267, %v298
    %v300 = vpop.f32.mrf.mxu0
    %v301 = vadd.f32 %v267, %v300
    %302 = vmatmul.bf16.gmra.mxu0 %v284
    %v303 = vpop.f32.mrf.mxu0
    %v304 = vadd.f32 %v267, %v303
    %v305 = vpop.f32.mrf.mxu0
    %v306 = vadd.f32 %v267, %v305
    %307 = vmatmul.bf16.gmra.mxu0 %v287
    %v308 = vpop.f32.mrf.mxu0
    %v309 = vadd.f32 %v267, %v308
    %v310 = vpop.f32.mrf.mxu0
    %v311 = vadd.f32 %v267, %v310
    %312 = vdwg.mxu0
    %v313 = vmax.f32 %v299, 0.0
    %v314 = vmax.f32 %v301, 0.0
    %v315 = vmax.f32 %v304, 0.0
    %v316 = vmax.f32 %v306, 0.0
    %v317 = vmax.f32 %v309, 0.0
    %v318 = vmax.f32 %v311, 0.0
    %v319 = vsel %vm67, %v313, 0.0
    %320 = vadd.xlane.f32.xlu0 %v319
    %v321 = vpop.xlane.xlu0 %320
    %v322 = vsel %vm67, %v314, 0.0
    %323 = vadd.xlane.f32.xlu0 %v322
    %v324 = vpop.xlane.xlu0 %323
    %v325 = vsel %vm67, %v315, 0.0
    %326 = vadd.xlane.f32.xlu0 %v325
    %v327 = vpop.xlane.xlu0 %326
    %v328 = vsel %vm67, %v316, 0.0
    %329 = vadd.xlane.f32.xlu0 %v328
    %v330 = vpop.xlane.xlu0 %329
    %v331 = vsel %vm67, %v317, 0.0
    %332 = vadd.xlane.f32.xlu0 %v331
    %v333 = vpop.xlane.xlu0 %332
    %v334 = vsel %vm67, %v318, 0.0
    %335 = vadd.xlane.f32.xlu0 %v334
    %v336 = vpop.xlane.xlu0 %335
    %v337 = vmul.f32 %v321, %v131
    %v338 = vmul.f32 %v324, %v131
    %v339 = vmul.f32 %v327, %v131
    %v340 = vmul.f32 %v330, %v131
    %v341 = vmul.f32 %v333, %v131
    %v342 = vmul.f32 %v336, %v131
    %v343 = vsub.f32 %v313, %v337
    %v344 = vsub.f32 %v314, %v338
    %v345 = vsub.f32 %v315, %v339
    %v346 = vsub.f32 %v316, %v340
    %v347 = vsub.f32 %v317, %v341
    %v348 = vsub.f32 %v318, %v342
    %v349 = vmul.f32 %v343, %v343
    %v350 = vmul.f32 %v344, %v344
    %v351 = vmul.f32 %v345, %v345
    %v352 = vmul.f32 %v346, %v346
    %v353 = vmul.f32 %v347, %v347
    %v354 = vmul.f32 %v348, %v348
    %v355 = vsel %vm67, %v349, 0.0
    %356 = vadd.xlane.f32.xlu0 %v355
    %v357 = vpop.xlane.xlu0 %356
    %v358 = vsel %vm67, %v350, 0.0
    %359 = vadd.xlane.f32.xlu0 %v358
    %v360 = vpop.xlane.xlu0 %359
    %v361 = vsel %vm67, %v351, 0.0
    %362 = vadd.xlane.f32.xlu0 %v361
    %v363 = vpop.xlane.xlu0 %362
    %v364 = vsel %vm67, %v352, 0.0
    %365 = vadd.xlane.f32.xlu0 %v364
    %v366 = vpop.xlane.xlu0 %365
    %v367 = vsel %vm67, %v353, 0.0
    %368 = vadd.xlane.f32.xlu0 %v367
    %v369 = vpop.xlane.xlu0 %368
    %v370 = vsel %vm67, %v354, 0.0
    %371 = vadd.xlane.f32.xlu0 %v370
    %v372 = vpop.xlane.xlu0 %371
    %v373 = vmul.f32 %v357, %v131
    %v374 = vmul.f32 %v360, %v131
    %v375 = vmul.f32 %v363, %v131
    %v376 = vmul.f32 %v366, %v131
    %v377 = vmul.f32 %v369, %v131
    %v378 = vmul.f32 %v372, %v131
    %v379 = vadd.f32 %v373, 1e-05
    %v380 = vadd.f32 %v374, 1e-05
    %v381 = vadd.f32 %v375, 1e-05
    %v382 = vadd.f32 %v376, 1e-05
    %v383 = vadd.f32 %v377, 1e-05
    %v384 = vadd.f32 %v378, 1e-05
    %v385 = vrsqrt.pop %v379
    %v386 = vmul.f32 %v385, %v379
    %v387 = vmul.f32 %v386, %v385
    %v388 = vmul.f32 0.5, %v387
    %v389 = vsub.f32 1.5, %v388
    %v390 = vmul.f32 %v385, %v389
    %vm391 = vweird.f32 %v379
    %vm392 = vweird.f32 %v385
    %vm393 = vmor %vm391, %vm392
    %v394 = vsel %vm393, %v385, %v390
    %v395 = vrsqrt.pop %v380
    %v396 = vmul.f32 %v395, %v380
    %v397 = vmul.f32 %v396, %v395
    %v398 = vmul.f32 0.5, %v397
    %v399 = vsub.f32 1.5, %v398
    %v400 = vmul.f32 %v395, %v399
    %vm401 = vweird.f32 %v380
    %vm402 = vweird.f32 %v395
    %vm403 = vmor %vm401, %vm402
    %v404 = vsel %vm403, %v395, %v400
    %v405 = vrsqrt.pop %v381
    %v406 = vmul.f32 %v405, %v381
    %v407 = vmul.f32 %v406, %v405
    %v408 = vmul.f32 0.5, %v407
    %v409 = vsub.f32 1.5, %v408
    %v410 = vmul.f32 %v405, %v409
    %vm411 = vweird.f32 %v381
    %vm412 = vweird.f32 %v405
    %vm413 = vmor %vm411, %vm412
    %v414 = vsel %vm413, %v405, %v410
    %v415 = vrsqrt.pop %v382
    %v416 = vmul.f32 %v415, %v382
    %v417 = vmul.f32 %v416, %v415
    %v418 = vmul.f32 0.5, %v417
    %v419 = vsub.f32 1.5, %v418
    %v420 = vmul.f32 %v415, %v419
    %vm421 = vweird.f32 %v382
    %vm422 = vweird.f32 %v415
    %vm423 = vmor %vm421, %vm422
    %v424 = vsel %vm423, %v415, %v420
    %v425 = vrsqrt.pop %v383
    %v426 = vmul.f32 %v425, %v383
    %v427 = vmul.f32 %v426, %v425
    %v428 = vmul.f32 0.5, %v427
    %v429 = vsub.f32 1.5, %v428
    %v430 = vmul.f32 %v425, %v429
    %vm431 = vweird.f32 %v383
    %vm432 = vweird.f32 %v425
    %vm433 = vmor %vm431, %vm432
    %v434 = vsel %vm433, %v425, %v430
    %v435 = vrsqrt.pop %v384
    %v436 = vmul.f32 %v435, %v384
    %v437 = vmul.f32 %v436, %v435
    %v438 = vmul.f32 0.5, %v437
    %v439 = vsub.f32 1.5, %v438
    %v440 = vmul.f32 %v435, %v439
    %vm441 = vweird.f32 %v384
    %vm442 = vweird.f32 %v435
    %vm443 = vmor %vm441, %vm442
    %v444 = vsel %vm443, %v435, %v440
    %v445 = vmul.f32 %v343, %v394
    %v446 = vmul.f32 %v344, %v404
    %v447 = vmul.f32 %v345, %v414
    %v448 = vmul.f32 %v346, %v424
    %v449 = vmul.f32 %v347, %v434
    %v450 = vmul.f32 %v348, %v444
    %v451 = vperm.slane %v46, 4
    %v452 = vmul.f32 %v445, %v451
    %v453 = vmul.f32 %v446, %v451
    %v454 = vmul.f32 %v447, %v451
    %v455 = vmul.f32 %v448, %v451
    %v456 = vmul.f32 %v449, %v451
    %v457 = vmul.f32 %v450, %v451
    %v458 = vperm.slane %v46, 5
    %v459 = vadd.f32 %v452, %v458
    %v460 = vadd.f32 %v453, %v458
    %v461 = vadd.f32 %v454, %v458
    %v462 = vadd.f32 %v455, %v458
    %v463 = vadd.f32 %v456, %v458
    %v464 = vadd.f32 %v457, %v458
    %v465 = vperm.slane %v46, 6
    %v466 = vmul.f32 %v459, %v465
    %v467 = vmul.f32 %v460, %v465
    %v468 = vmul.f32 %v461, %v465
    %v469 = vmul.f32 %v462, %v465
    %v470 = vmul.f32 %v463, %v465
    %v471 = vmul.f32 %v464, %v465
    %v472 = vsel %vm67, %v466, 0.0
    %473 = vadd.xlane.f32.xlu0 %v472
    %v474 = vpop.xlane.xlu0 %473
    %v475 = vsel %vm67, %v467, 0.0
    %476 = vadd.xlane.f32.xlu0 %v475
    %v477 = vpop.xlane.xlu0 %476
    %v478 = vsel %vm67, %v468, 0.0
    %479 = vadd.xlane.f32.xlu0 %v478
    %v480 = vpop.xlane.xlu0 %479
    %v481 = vsel %vm67, %v469, 0.0
    %482 = vadd.xlane.f32.xlu0 %v481
    %v483 = vpop.xlane.xlu0 %482
    %v484 = vsel %vm67, %v470, 0.0
    %485 = vadd.xlane.f32.xlu0 %v484
    %v486 = vpop.xlane.xlu0 %485
    %v487 = vsel %vm67, %v471, 0.0
    %488 = vadd.xlane.f32.xlu0 %v487
    %v489 = vpop.xlane.xlu0 %488
    %v491 = vrot.slane %v46, 7
    %s492 = vtos %v491
    %v493 = vstv %s492
    %v495 = vadd.f32 %v474, %v493
    %v496 = vadd.f32 %v477, %v493
    %v497 = vadd.f32 %v480, %v493
    %v498 = vadd.f32 %v483, %v493
    %v499 = vadd.f32 %v486, %v493
    %v500 = vadd.f32 %v489, %v493
    %v501 = vxor.u32 %v495, 2147483648
    %v502 = vxor.u32 %v496, 2147483648
    %v503 = vxor.u32 %v497, 2147483648
    %v504 = vxor.u32 %v498, 2147483648
    %v505 = vxor.u32 %v499, 2147483648
    %v506 = vxor.u32 %v500, 2147483648
    %v507 = vmul.f32 %v501, 1.442695
    %v508 = vpow.pop %v507
    %v509 = vmul.f32 %v502, 1.442695
    %v510 = vpow.pop %v509
    %v511 = vmul.f32 %v503, 1.442695
    %v512 = vpow.pop %v511
    %v513 = vmul.f32 %v504, 1.442695
    %v514 = vpow.pop %v513
    %v515 = vmul.f32 %v505, 1.442695
    %v516 = vpow.pop %v515
    %v517 = vmul.f32 %v506, 1.442695
    %v518 = vpow.pop %v517
    %v519 = vadd.f32 %v508, 1.0
    %v520 = vadd.f32 %v510, 1.0
    %v521 = vadd.f32 %v512, 1.0
    %v522 = vadd.f32 %v514, 1.0
    %v523 = vadd.f32 %v516, 1.0
    %v524 = vadd.f32 %v518, 1.0
    %v525 = vrcp.pop %v519
    %v526 = vmul.f32 %v519, %v525
    %v527 = vsub.f32 1.0, %v526
    %v528 = vmul.f32 %v525, %v527
    %v529 = vadd.f32 %v525, %v528
    %vm530 = vweird.f32 %v519
    %vm531 = vweird.f32 %v525
    %vm532 = vmor %vm530, %vm531
    %v533 = vsel %vm532, %v525, %v529
    %v534 = vand.u32 2147483647, %v519
    %vm535 = vcmp.eq.f32.partialorder %v534, 8.507059e+37
    %v536 = vand.u32 %v519, 2147483648
    %v537 = vor.u32 1.1754944e-38, %v536
    %v538 = vsel %vm535, %v537, %v533
    %v539 = vmul.f32 1.0, %v538
    %v540 = vrcp.pop %v520
    %v541 = vmul.f32 %v520, %v540
    %v542 = vsub.f32 1.0, %v541
    %v543 = vmul.f32 %v540, %v542
    %v544 = vadd.f32 %v540, %v543
    %vm545 = vweird.f32 %v520
    %vm546 = vweird.f32 %v540
    %vm547 = vmor %vm545, %vm546
    %v548 = vsel %vm547, %v540, %v544
    %v549 = vand.u32 2147483647, %v520
    %vm550 = vcmp.eq.f32.partialorder %v549, 8.507059e+37
    %v551 = vand.u32 %v520, 2147483648
    %v552 = vor.u32 1.1754944e-38, %v551
    %v553 = vsel %vm550, %v552, %v548
    %v554 = vmul.f32 1.0, %v553
    %v555 = vrcp.pop %v521
    %v556 = vmul.f32 %v521, %v555
    %v557 = vsub.f32 1.0, %v556
    %v558 = vmul.f32 %v555, %v557
    %v559 = vadd.f32 %v555, %v558
    %vm560 = vweird.f32 %v521
    %vm561 = vweird.f32 %v555
    %vm562 = vmor %vm560, %vm561
    %v563 = vsel %vm562, %v555, %v559
    %v564 = vand.u32 2147483647, %v521
    %vm565 = vcmp.eq.f32.partialorder %v564, 8.507059e+37
    %v566 = vand.u32 %v521, 2147483648
    %v567 = vor.u32 1.1754944e-38, %v566
    %v568 = vsel %vm565, %v567, %v563
    %v569 = vmul.f32 1.0, %v568
    %v570 = vrcp.pop %v522
    %v571 = vmul.f32 %v522, %v570
    %v572 = vsub.f32 1.0, %v571
    %v573 = vmul.f32 %v570, %v572
    %v574 = vadd.f32 %v570, %v573
    %vm575 = vweird.f32 %v522
    %vm576 = vweird.f32 %v570
    %vm577 = vmor %vm575, %vm576
    %v578 = vsel %vm577, %v570, %v574
    %v579 = vand.u32 2147483647, %v522
    %vm580 = vcmp.eq.f32.partialorder %v579, 8.507059e+37
    %v581 = vand.u32 %v522, 2147483648
    %v582 = vor.u32 1.1754944e-38, %v581
    %v583 = vsel %vm580, %v582, %v578
    %v584 = vmul.f32 1.0, %v583
    %v585 = vrcp.pop %v523
    %v586 = vmul.f32 %v523, %v585
    %v587 = vsub.f32 1.0, %v586
    %v588 = vmul.f32 %v585, %v587
    %v589 = vadd.f32 %v585, %v588
    %vm590 = vweird.f32 %v523
    %vm591 = vweird.f32 %v585
    %vm592 = vmor %vm590, %vm591
    %v593 = vsel %vm592, %v585, %v589
    %v594 = vand.u32 2147483647, %v523
    %vm595 = vcmp.eq.f32.partialorder %v594, 8.507059e+37
    %v596 = vand.u32 %v523, 2147483648
    %v597 = vor.u32 1.1754944e-38, %v596
    %v598 = vsel %vm595, %v597, %v593
    %v599 = vmul.f32 1.0, %v598
    %v600 = vrcp.pop %v524
    %v601 = vmul.f32 %v524, %v600
    %v602 = vsub.f32 1.0, %v601
    %v603 = vmul.f32 %v600, %v602
    %v604 = vadd.f32 %v600, %v603
    %vm605 = vweird.f32 %v524
    %vm606 = vweird.f32 %v600
    %vm607 = vmor %vm605, %vm606
    %v608 = vsel %vm607, %v600, %v604
    %v609 = vand.u32 2147483647, %v524
    %vm610 = vcmp.eq.f32.partialorder %v609, 8.507059e+37
    %v611 = vand.u32 %v524, 2147483648
    %v612 = vor.u32 1.1754944e-38, %v611
    %v613 = vsel %vm610, %v612, %v608
    %v614 = vmul.f32 1.0, %v613
    %v615 = vlaneseq
    %v616 = vand.u32 %v615, 127
    %v617 = vcvt.s32.f32 %v616
    %v624 = vperm.slane %v539, %v616
    %v625 = vadd.s32 %v616, 4294967288
    %v626 = vperm.slane %v554, %v625
    %vm627 = vcmask 130112
    %v628 = vsel %vm627, %v626, %v624
    %v629 = vperm.slane %v569, %v616
    %v630 = vperm.slane %v584, %v625
    %v631 = vsel %vm627, %v630, %v629
    %v632 = vperm.slane %v599, %v616
    %v633 = vperm.slane %v614, %v625
    %v634 = vsel %vm627, %v633, %v632
    %vm635 = vcmask 1041409
    %v636 = vsel %vm635, %v631, %v628
    %vm637 = vcmask 1042434
    %v638 = vsel %vm637, %v634, %v636
    %vm640 = vcmask 124928
    %v641 = vsel %vm640, %v638, -inf
    %642 = vmax.xlane.f32.xlu0 %v641
    %v643 = vpop.xlane.xlu0 %642
    %v645 = vperm.slane %v643, 0
    %v646 = vperm.slane %v643, 1
    %v647 = vperm.slane %v643, 2
    %vm651 = vcmp.ge.f32.partialorder %v539, %v645
    %vm652 = vcmp.ge.f32.partialorder %v554, %v645
    %vm653 = vcmp.ge.f32.partialorder %v569, %v646
    %vm654 = vcmp.ge.f32.partialorder %v584, %v646
    %vm655 = vcmp.ge.f32.partialorder %v599, %v647
    %vm656 = vcmp.ge.f32.partialorder %v614, %v647
    %v658 = vlaneseq
    %v659 = vshrl.u32 %v658, 7
    %661 = vset.pattern.permute.xlu0 %v659
    %662 = vperm.xlu0 %661, %v617
    %v663 = vpop.permute.xlu0 %662
    %v664 = vlaneseq
    %v665 = vshrl.u32 %v664, 7
    %v666 = vadd.s32 %v665, 8
    %667 = vset.pattern.permute.xlu0 %v666
    %668 = vperm.xlu0 %667, %v617
    %v669 = vpop.permute.xlu0 %668
    %v672 = vsel %vm651, %v663, 16.0
    %v673 = vsel %vm652, %v669, 16.0
    %v674 = vsel %vm653, %v663, 16.0
    %v675 = vsel %vm654, %v669, 16.0
    %v676 = vsel %vm655, %v663, 16.0
    %v677 = vsel %vm656, %v669, 16.0
    %684 = vset.pattern.permute.xlu0 0
    %685 = vperm.xlu0 %684, %v672
    %v686 = vpop.permute.xlu0 %685
    %687 = vset.pattern.permute.xlu0 0
    %688 = vperm.xlu0 %687, %v673
    %v689 = vpop.permute.xlu0 %688
    %690 = vset.pattern.permute.xlu0 0
    %691 = vperm.xlu0 %690, %v674
    %v692 = vpop.permute.xlu0 %691
    %693 = vset.pattern.permute.xlu0 0
    %694 = vperm.xlu0 %693, %v675
    %v695 = vpop.permute.xlu0 %694
    %696 = vset.pattern.permute.xlu0 0
    %697 = vperm.xlu0 %696, %v676
    %v698 = vpop.permute.xlu0 %697
    %699 = vset.pattern.permute.xlu0 0
    %700 = vperm.xlu0 %699, %v677
    %v701 = vpop.permute.xlu0 %700
    %v702 = vperm.slane %v686, %v616
    %v703 = vperm.slane %v689, %v625
    %v704 = vsel %vm627, %v703, %v702
    %v705 = vperm.slane %v692, %v616
    %v706 = vperm.slane %v695, %v625
    %v707 = vsel %vm627, %v706, %v705
    %v708 = vperm.slane %v698, %v616
    %v709 = vperm.slane %v701, %v625
    %v710 = vsel %vm627, %v709, %v708
    %v711 = vsel %vm635, %v707, %v704
    %v712 = vsel %vm637, %v710, %v711
    %v714 = vsel %vm640, %v712, inf
    %715 = vmin.xlane.f32.xlu0 %v714
    %v716 = vpop.xlane.xlu0 %715
    %vm717 = vcmp.eq.f32.partialorder %v617, %v716
    %vm718 = vcmp.gt.f32.partialorder %v643, 0.7
    %v719 = vsel %vm718, 1, 0
    %v720 = vcvt.s32.f32 %v719
    %v721 = vsel %vm717, %v720, 0.0
    %v722 = vadd.f32 %v721, 0.0
    %v723 = vsel %vm717, -1.0, %v638
    %v724 = vsel %vm640, %v723, -inf
    %725 = vmax.xlane.f32.xlu0 %v724
    %v726 = vpop.xlane.xlu0 %725
    %vm727 = vcmp.ge.f32.partialorder %v723, %v726
    %v728 = vsel %vm727, %v617, 16.0
    %v729 = vsel %vm640, %v728, inf
    %730 = vmin.xlane.f32.xlu0 %v729
    %v731 = vpop.xlane.xlu0 %730
    %vm732 = vcmp.eq.f32.partialorder %v617, %v731
    %vm733 = vcmp.gt.f32.partialorder %v726, 0.7
    %v734 = vsel %vm733, 1, 0
    %v735 = vcvt.s32.f32 %v734
    %v736 = vsel %vm732, %v735, 0.0
    %v737 = vadd.f32 %v722, %v736
    %v738 = vsel %vm732, -1.0, %v723
    %v739 = vsel %vm640, %v738, -inf
    %740 = vmax.xlane.f32.xlu0 %v739
    %v741 = vpop.xlane.xlu0 %740
    %vm742 = vcmp.ge.f32.partialorder %v738, %v741
    %v743 = vsel %vm742, %v617, 16.0
    %v744 = vsel %vm640, %v743, inf
    %745 = vmin.xlane.f32.xlu0 %v744
    %v746 = vpop.xlane.xlu0 %745
    %vm747 = vcmp.eq.f32.partialorder %v617, %v746
    %vm748 = vcmp.gt.f32.partialorder %v741, 0.7
    %v749 = vsel %vm748, 1, 0
    %v750 = vcvt.s32.f32 %v749
    %v751 = vsel %vm747, %v750, 0.0
    %v752 = vadd.f32 %v737, %v751
    %v753 = vsel %vm747, -1.0, %v738
    %v754 = vsel %vm640, %v753, -inf
    %755 = vmax.xlane.f32.xlu0 %v754
    %v756 = vpop.xlane.xlu0 %755
    %vm757 = vcmp.ge.f32.partialorder %v753, %v756
    %v758 = vsel %vm757, %v617, 16.0
    %v759 = vsel %vm640, %v758, inf
    %760 = vmin.xlane.f32.xlu0 %v759
    %v761 = vpop.xlane.xlu0 %760
    %vm762 = vcmp.eq.f32.partialorder %v617, %v761
    %vm763 = vcmp.gt.f32.partialorder %v756, 0.7
    %v764 = vsel %vm763, 1, 0
    %v765 = vcvt.s32.f32 %v764
    %v766 = vsel %vm762, %v765, 0.0
    %v767 = vadd.f32 %v752, %v766
    %v768 = vld [vmem:[%s1] sm:$0xff]
    %v769 = vld [vmem:[%s1 + $0x8] sm:$0xff]
    %v770 = vld [vmem:[%s7] sm:$0xf]
    %v771 = vld [vmem:[%s7 + $0x4] sm:$0xf]
    %v772 = vld [vmem:[%s7 + $0x8] sm:$0xf]
    %v773 = vld [vmem:[%s7 + $0xc] sm:$0xf]
    %v774 = vld [vmem:[%s8] sm:$0x1]
    %v776 = vperm.slane %v774, 0
    %v782 = vunpack.c.l.b16 %v770
    %v783 = vunpack.c.l.b16 %v771
    %v784 = vunpack.c.l.b16 %v772
    %v785 = vunpack.c.l.b16 %v773
    %v786 = vpack.c.b16 %v783, %v782
    %v787 = vpack.c.b16 %v785, %v784
    %790 = vmatpush.bf16.msra.mxu0 0
    %791 = vmatpush.bf16.msra.mxu0 0
    %792 = vmatpush.bf16.msra.mxu0 0
    %793 = vmatpush.bf16.msra.mxu0 0
    %794 = vmatpush.bf16.msra.mxu0 0
    %795 = vmatpush.bf16.msra.mxu0 0
    %796 = vmatpush.bf16.msra.mxu0 %v787
    %797 = vmatpush.bf16.msra.mxu0 %v786
    %798 = vmatmul.bf16.gmra.mxu0 %v69
    %v799 = vpop.f32.mrf.mxu0
    %v800 = vadd.f32 %v776, %v799
    %v801 = vpop.f32.mrf.mxu0
    %v802 = vadd.f32 %v776, %v801
    %803 = vmatmul.bf16.gmra.mxu0 %v72
    %v804 = vpop.f32.mrf.mxu0
    %v805 = vadd.f32 %v776, %v804
    %v806 = vpop.f32.mrf.mxu0
    %v807 = vadd.f32 %v776, %v806
    %808 = vmatmul.bf16.gmra.mxu0 %v75
    %v809 = vpop.f32.mrf.mxu0
    %v810 = vadd.f32 %v776, %v809
    %v811 = vpop.f32.mrf.mxu0
    %v812 = vadd.f32 %v776, %v811
    %813 = vdwg.mxu0
    %v814 = vpack.c.bf16 %v769, %v768
    %v816 = vsel %vm67, %v814, 0
    %818 = vmatpush.bf16.msra.mxu0 0
    %819 = vmatpush.bf16.msra.mxu0 0
    %820 = vmatpush.bf16.msra.mxu0 0
    %821 = vmatpush.bf16.msra.mxu0 0
    %822 = vmatpush.bf16.msra.mxu0 0
    %823 = vmatpush.bf16.msra.mxu0 0
    %824 = vmatpush.bf16.msra.mxu0 %v787
    %825 = vmatpush.bf16.msra.mxu0 %v786
    %826 = vmatmul.bf16.gmra.mxu0 %v816
    %v827 = vpop.f32.mrf.mxu0
    %v828 = vadd.f32 0.0, %v827
    %v829 = vpop.f32.mrf.mxu0
    %v830 = vadd.f32 0.0, %v829
    %831 = vdwg.mxu0
    %v832 = vadd.f32 %v800, %v828
    %v833 = vadd.f32 %v802, %v830
    %v834 = vadd.f32 %v805, %v828
    %v835 = vadd.f32 %v807, %v830
    %v836 = vadd.f32 %v810, %v828
    %v837 = vadd.f32 %v812, %v830
    %v838 = vpack.c.bf16 %v832, %v832
    %v839 = vpack.c.bf16 %v833, %v833
    %v840 = vpack.c.bf16 %v834, %v834
    %v841 = vpack.c.bf16 %v835, %v835
    %v842 = vpack.c.bf16 %v836, %v836
    %v843 = vpack.c.bf16 %v837, %v837
    %v846 = vunpack.c.l.b16 %v838
    %v847 = vunpack.c.l.b16 %v839
    %v848 = vpack.c.b16 %v847, %v846
    %v851 = vunpack.c.l.b16 %v840
    %v852 = vunpack.c.l.b16 %v841
    %v853 = vpack.c.b16 %v852, %v851
    %854 = vrot.lane.b32.xlu0 %v853, 96
    %v855 = vpop.permute.xlu0 %854
    %vm856 = vcmask 130048
    %v858 = vsel %vm856, %v848, 0
    %v861 = vsel %vm856, %v855, 0
    %863 = vmatpush.bf16.xpose.msra.mxu0 0
    %864 = vmatpush.bf16.xpose.msra.mxu0 0
    %865 = vmatpush.bf16.xpose.msra.mxu0 0
    %866 = vmatpush.bf16.xpose.msra.mxu0 0
    %867 = vmatpush.bf16.xpose.msra.mxu0 0
    %868 = vmatpush.bf16.xpose.msra.mxu0 0
    %869 = vmatpush.bf16.xpose.msra.mxu0 0
    %870 = vmatpush.bf16.xpose.msra.mxu0 %v861
    %871 = vmatmul.bf16.gmra.mxu0 %v858
    %v872 = vpop.f32.mrf.mxu0
    %v873 = vadd.f32 0.0, %v872
    %v874 = vpop.f32.mrf.mxu0
    %v875 = vadd.f32 0.0, %v874
    %876 = vdwg.mxu0
    %v879 = vunpack.c.l.b16 %v842
    %v880 = vunpack.c.l.b16 %v843
    %v881 = vpack.c.b16 %v880, %v879
    %882 = vrot.lane.b32.xlu0 %v881, 96
    %v883 = vpop.permute.xlu0 %882
    %v885 = vsel %vm856, %v883, 0
    %887 = vmatpush.bf16.xpose.msra.mxu0 0
    %888 = vmatpush.bf16.xpose.msra.mxu0 0
    %889 = vmatpush.bf16.xpose.msra.mxu0 0
    %890 = vmatpush.bf16.xpose.msra.mxu0 0
    %891 = vmatpush.bf16.xpose.msra.mxu0 0
    %892 = vmatpush.bf16.xpose.msra.mxu0 0
    %893 = vmatpush.bf16.xpose.msra.mxu0 0
    %894 = vmatpush.bf16.xpose.msra.mxu0 %v885
    %895 = vmatmul.bf16.gmra.mxu0 %v858
    %v896 = vpop.f32.mrf.mxu0
    %v897 = vadd.f32 0.0, %v896
    %v898 = vpop.f32.mrf.mxu0
    %v899 = vadd.f32 0.0, %v898
    %900 = vdwg.mxu0
    %v901 = vmul.f32 %v873, 0.25
    %v902 = vmul.f32 %v875, 0.25
    %v903 = vmul.f32 %v897, 0.25
    %v904 = vmul.f32 %v899, 0.25
    %v905 = vsel %vm856, %v901, -inf
    %906 = vmax.xlane.f32.xlu0 %v905
    %v907 = vpop.xlane.xlu0 %906
    %v908 = vsel %vm856, %v902, -inf
    %909 = vmax.xlane.f32.xlu0 %v908
    %v910 = vpop.xlane.xlu0 %909
    %v911 = vsel %vm856, %v903, -inf
    %912 = vmax.xlane.f32.xlu0 %v911
    %v913 = vpop.xlane.xlu0 %912
    %v914 = vsel %vm856, %v904, -inf
    %915 = vmax.xlane.f32.xlu0 %v914
    %v916 = vpop.xlane.xlu0 %915
    %v917 = vsub.f32 %v901, %v907
    %v918 = vsub.f32 %v902, %v910
    %v919 = vsub.f32 %v903, %v913
    %v920 = vsub.f32 %v904, %v916
    %v921 = vmul.f32 %v917, 1.442695
    %v922 = vpow.pop %v921
    %v923 = vmul.f32 %v918, 1.442695
    %v924 = vpow.pop %v923
    %v925 = vmul.f32 %v919, 1.442695
    %v926 = vpow.pop %v925
    %v927 = vmul.f32 %v920, 1.442695
    %v928 = vpow.pop %v927
    %v929 = vsel %vm856, %v922, 0.0
    %930 = vadd.xlane.f32.xlu0 %v929
    %v931 = vpop.xlane.xlu0 %930
    %v932 = vsel %vm856, %v924, 0.0
    %933 = vadd.xlane.f32.xlu0 %v932
    %v934 = vpop.xlane.xlu0 %933
    %v935 = vsel %vm856, %v926, 0.0
    %936 = vadd.xlane.f32.xlu0 %v935
    %v937 = vpop.xlane.xlu0 %936
    %v938 = vsel %vm856, %v928, 0.0
    %939 = vadd.xlane.f32.xlu0 %v938
    %v940 = vpop.xlane.xlu0 %939
    %v941 = vrcp.pop %v931
    %v942 = vmul.f32 %v931, %v941
    %v943 = vsub.f32 1.0, %v942
    %v944 = vmul.f32 %v941, %v943
    %v945 = vadd.f32 %v941, %v944
    %vm946 = vweird.f32 %v931
    %vm947 = vweird.f32 %v941
    %vm948 = vmor %vm946, %vm947
    %v949 = vsel %vm948, %v941, %v945
    %v950 = vand.u32 2147483647, %v931
    %vm951 = vcmp.eq.f32.partialorder %v950, 8.507059e+37
    %v952 = vand.u32 %v931, 2147483648
    %v953 = vor.u32 1.1754944e-38, %v952
    %v954 = vsel %vm951, %v953, %v949
    %v955 = vrcp.pop %v934
    %v956 = vmul.f32 %v934, %v955
    %v957 = vsub.f32 1.0, %v956
    %v958 = vmul.f32 %v955, %v957
    %v959 = vadd.f32 %v955, %v958
    %vm960 = vweird.f32 %v934
    %vm961 = vweird.f32 %v955
    %vm962 = vmor %vm960, %vm961
    %v963 = vsel %vm962, %v955, %v959
    %v964 = vand.u32 2147483647, %v934
    %vm965 = vcmp.eq.f32.partialorder %v964, 8.507059e+37
    %v966 = vand.u32 %v934, 2147483648
    %v967 = vor.u32 1.1754944e-38, %v966
    %v968 = vsel %vm965, %v967, %v963
    %v969 = vrcp.pop %v937
    %v970 = vmul.f32 %v937, %v969
    %v971 = vsub.f32 1.0, %v970
    %v972 = vmul.f32 %v969, %v971
    %v973 = vadd.f32 %v969, %v972
    %vm974 = vweird.f32 %v937
    %vm975 = vweird.f32 %v969
    %vm976 = vmor %vm974, %vm975
    %v977 = vsel %vm976, %v969, %v973
    %v978 = vand.u32 2147483647, %v937
    %vm979 = vcmp.eq.f32.partialorder %v978, 8.507059e+37
    %v980 = vand.u32 %v937, 2147483648
    %v981 = vor.u32 1.1754944e-38, %v980
    %v982 = vsel %vm979, %v981, %v977
    %v983 = vrcp.pop %v940
    %v984 = vmul.f32 %v940, %v983
    %v985 = vsub.f32 1.0, %v984
    %v986 = vmul.f32 %v983, %v985
    %v987 = vadd.f32 %v983, %v986
    %vm988 = vweird.f32 %v940
    %vm989 = vweird.f32 %v983
    %vm990 = vmor %vm988, %vm989
    %v991 = vsel %vm990, %v983, %v987
    %v992 = vand.u32 2147483647, %v940
    %vm993 = vcmp.eq.f32.partialorder %v992, 8.507059e+37
    %v994 = vand.u32 %v940, 2147483648
    %v995 = vor.u32 1.1754944e-38, %v994
    %v996 = vsel %vm993, %v995, %v991
    %v997 = vmul.f32 %v922, %v954
    %v998 = vmul.f32 %v924, %v968
    %v999 = vmul.f32 %v926, %v982
    %v1000 = vmul.f32 %v928, %v996
    %v1001 = vpack.c.bf16 %v997, %v997
    %v1002 = vpack.c.bf16 %v998, %v998
    %v1003 = vpack.c.bf16 %v999, %v999
    %v1004 = vpack.c.bf16 %v1000, %v1000
    %v1005 = vpack.c.bf16 %v805, %v805
    %v1006 = vpack.c.bf16 %v807, %v807
    %v1007 = vpack.c.bf16 %v810, %v810
    %v1008 = vpack.c.bf16 %v812, %v812
    %v1011 = vunpack.c.l.b16 %v1001
    %v1012 = vunpack.c.l.b16 %v1002
    %v1013 = vpack.c.b16 %v1012, %v1011
    %v1016 = vunpack.c.l.b16 %v1005
    %v1017 = vunpack.c.l.b16 %v1006
    %v1018 = vpack.c.b16 %v1017, %v1016
    %1019 = vrot.lane.b32.xlu0 %v1018, 64
    %v1020 = vpop.permute.xlu0 %1019
    %v1023 = vsel %vm856, %v1013, 0
    %1025 = vmatpush.bf16.msra.mxu0 0
    %1026 = vmatpush.bf16.msra.mxu0 0
    %1027 = vmatpush.bf16.msra.mxu0 0
    %1028 = vmatpush.bf16.msra.mxu0 0
    %1029 = vmatpush.bf16.msra.mxu0 0
    %1030 = vmatpush.bf16.msra.mxu0 0
    %1031 = vmatpush.bf16.msra.mxu0 0
    %1032 = vmatpush.bf16.msra.mxu0 %v1020
    %1033 = vmatmul.bf16.gmra.mxu0 %v1023
    %v1034 = vpop.f32.mrf.mxu0
    %v1035 = vadd.f32 0.0, %v1034
    %v1036 = vpop.f32.mrf.mxu0
    %v1037 = vadd.f32 0.0, %v1036
    %1038 = vdwg.mxu0
    %v1041 = vunpack.c.l.b16 %v1003
    %v1042 = vunpack.c.l.b16 %v1004
    %v1043 = vpack.c.b16 %v1042, %v1041
    %v1046 = vunpack.c.l.b16 %v1007
    %v1047 = vunpack.c.l.b16 %v1008
    %v1048 = vpack.c.b16 %v1047, %v1046
    %1049 = vrot.lane.b32.xlu0 %v1048, 64
    %v1050 = vpop.permute.xlu0 %1049
    %v1053 = vsel %vm856, %v1043, 0
    %1055 = vmatpush.bf16.msra.mxu0 0
    %1056 = vmatpush.bf16.msra.mxu0 0
    %1057 = vmatpush.bf16.msra.mxu0 0
    %1058 = vmatpush.bf16.msra.mxu0 0
    %1059 = vmatpush.bf16.msra.mxu0 0
    %1060 = vmatpush.bf16.msra.mxu0 0
    %1061 = vmatpush.bf16.msra.mxu0 0
    %1062 = vmatpush.bf16.msra.mxu0 %v1050
    %1063 = vmatmul.bf16.gmra.mxu0 %v1053
    %v1064 = vpop.f32.mrf.mxu0
    %v1065 = vadd.f32 0.0, %v1064
    %v1066 = vpop.f32.mrf.mxu0
    %v1067 = vadd.f32 0.0, %v1066
    %1068 = vdwg.mxu0
    %v1069 = vsel %vm856, %v1035, 0.0
    %v1070 = vsel %vm856, %v1065, 0.0
    %v1071 = vadd.f32 %v1069, %v1070
    %v1072 = vsel %vm856, %v1037, 0.0
    %v1073 = vsel %vm856, %v1067, 0.0
    %v1074 = vadd.f32 %v1072, %v1073
    %1075 = vrot.lane.b32.xlu0 %v848, 112
    %v1076 = vpop.permute.xlu0 %1075
    %1077 = vrot.lane.b32.xlu0 %v853, 80
    %v1078 = vpop.permute.xlu0 %1077
    %v1080 = vsel %vm856, %v1076, 0
    %v1083 = vsel %vm856, %v1078, 0
    %1085 = vmatpush.bf16.xpose.msra.mxu0 0
    %1086 = vmatpush.bf16.xpose.msra.mxu0 0
    %1087 = vmatpush.bf16.xpose.msra.mxu0 0
    %1088 = vmatpush.bf16.xpose.msra.mxu0 0
    %1089 = vmatpush.bf16.xpose.msra.mxu0 0
    %1090 = vmatpush.bf16.xpose.msra.mxu0 0
    %1091 = vmatpush.bf16.xpose.msra.mxu0 0
    %1092 = vmatpush.bf16.xpose.msra.mxu0 %v1083
    %1093 = vmatmul.bf16.gmra.mxu0 %v1080
    %v1094 = vpop.f32.mrf.mxu0
    %v1095 = vadd.f32 0.0, %v1094
    %v1096 = vpop.f32.mrf.mxu0
    %v1097 = vadd.f32 0.0, %v1096
    %1098 = vdwg.mxu0
    %1099 = vrot.lane.b32.xlu0 %v881, 80
    %v1100 = vpop.permute.xlu0 %1099
    %v1102 = vsel %vm856, %v1100, 0
    %1104 = vmatpush.bf16.xpose.msra.mxu0 0
    %1105 = vmatpush.bf16.xpose.msra.mxu0 0
    %1106 = vmatpush.bf16.xpose.msra.mxu0 0
    %1107 = vmatpush.bf16.xpose.msra.mxu0 0
    %1108 = vmatpush.bf16.xpose.msra.mxu0 0
    %1109 = vmatpush.bf16.xpose.msra.mxu0 0
    %1110 = vmatpush.bf16.xpose.msra.mxu0 0
    %1111 = vmatpush.bf16.xpose.msra.mxu0 %v1102
    %1112 = vmatmul.bf16.gmra.mxu0 %v1080
    %v1113 = vpop.f32.mrf.mxu0
    %v1114 = vadd.f32 0.0, %v1113
    %v1115 = vpop.f32.mrf.mxu0
    %v1116 = vadd.f32 0.0, %v1115
    %1117 = vdwg.mxu0
    %v1118 = vmul.f32 %v1095, 0.25
    %v1119 = vmul.f32 %v1097, 0.25
    %v1120 = vmul.f32 %v1114, 0.25
    %v1121 = vmul.f32 %v1116, 0.25
    %v1122 = vsel %vm856, %v1118, -inf
    %1123 = vmax.xlane.f32.xlu0 %v1122
    %v1124 = vpop.xlane.xlu0 %1123
    %v1125 = vsel %vm856, %v1119, -inf
    %1126 = vmax.xlane.f32.xlu0 %v1125
    %v1127 = vpop.xlane.xlu0 %1126
    %v1128 = vsel %vm856, %v1120, -inf
    %1129 = vmax.xlane.f32.xlu0 %v1128
    %v1130 = vpop.xlane.xlu0 %1129
    %v1131 = vsel %vm856, %v1121, -inf
    %1132 = vmax.xlane.f32.xlu0 %v1131
    %v1133 = vpop.xlane.xlu0 %1132
    %v1134 = vsub.f32 %v1118, %v1124
    %v1135 = vsub.f32 %v1119, %v1127
    %v1136 = vsub.f32 %v1120, %v1130
    %v1137 = vsub.f32 %v1121, %v1133
    %v1138 = vmul.f32 %v1134, 1.442695
    %v1139 = vpow.pop %v1138
    %v1140 = vmul.f32 %v1135, 1.442695
    %v1141 = vpow.pop %v1140
    %v1142 = vmul.f32 %v1136, 1.442695
    %v1143 = vpow.pop %v1142
    %v1144 = vmul.f32 %v1137, 1.442695
    %v1145 = vpow.pop %v1144
    %v1146 = vsel %vm856, %v1139, 0.0
    %1147 = vadd.xlane.f32.xlu0 %v1146
    %v1148 = vpop.xlane.xlu0 %1147
    %v1149 = vsel %vm856, %v1141, 0.0
    %1150 = vadd.xlane.f32.xlu0 %v1149
    %v1151 = vpop.xlane.xlu0 %1150
    %v1152 = vsel %vm856, %v1143, 0.0
    %1153 = vadd.xlane.f32.xlu0 %v1152
    %v1154 = vpop.xlane.xlu0 %1153
    %v1155 = vsel %vm856, %v1145, 0.0
    %1156 = vadd.xlane.f32.xlu0 %v1155
    %v1157 = vpop.xlane.xlu0 %1156
    %v1158 = vrcp.pop %v1148
    %v1159 = vmul.f32 %v1148, %v1158
    %v1160 = vsub.f32 1.0, %v1159
    %v1161 = vmul.f32 %v1158, %v1160
    %v1162 = vadd.f32 %v1158, %v1161
    %vm1163 = vweird.f32 %v1148
    %vm1164 = vweird.f32 %v1158
    %vm1165 = vmor %vm1163, %vm1164
    %v1166 = vsel %vm1165, %v1158, %v1162
    %v1167 = vand.u32 2147483647, %v1148
    %vm1168 = vcmp.eq.f32.partialorder %v1167, 8.507059e+37
    %v1169 = vand.u32 %v1148, 2147483648
    %v1170 = vor.u32 1.1754944e-38, %v1169
    %v1171 = vsel %vm1168, %v1170, %v1166
    %v1172 = vrcp.pop %v1151
    %v1173 = vmul.f32 %v1151, %v1172
    %v1174 = vsub.f32 1.0, %v1173
    %v1175 = vmul.f32 %v1172, %v1174
    %v1176 = vadd.f32 %v1172, %v1175
    %vm1177 = vweird.f32 %v1151
    %vm1178 = vweird.f32 %v1172
    %vm1179 = vmor %vm1177, %vm1178
    %v1180 = vsel %vm1179, %v1172, %v1176
    %v1181 = vand.u32 2147483647, %v1151
    %vm1182 = vcmp.eq.f32.partialorder %v1181, 8.507059e+37
    %v1183 = vand.u32 %v1151, 2147483648
    %v1184 = vor.u32 1.1754944e-38, %v1183
    %v1185 = vsel %vm1182, %v1184, %v1180
    %v1186 = vrcp.pop %v1154
    %v1187 = vmul.f32 %v1154, %v1186
    %v1188 = vsub.f32 1.0, %v1187
    %v1189 = vmul.f32 %v1186, %v1188
    %v1190 = vadd.f32 %v1186, %v1189
    %vm1191 = vweird.f32 %v1154
    %vm1192 = vweird.f32 %v1186
    %vm1193 = vmor %vm1191, %vm1192
    %v1194 = vsel %vm1193, %v1186, %v1190
    %v1195 = vand.u32 2147483647, %v1154
    %vm1196 = vcmp.eq.f32.partialorder %v1195, 8.507059e+37
    %v1197 = vand.u32 %v1154, 2147483648
    %v1198 = vor.u32 1.1754944e-38, %v1197
    %v1199 = vsel %vm1196, %v1198, %v1194
    %v1200 = vrcp.pop %v1157
    %v1201 = vmul.f32 %v1157, %v1200
    %v1202 = vsub.f32 1.0, %v1201
    %v1203 = vmul.f32 %v1200, %v1202
    %v1204 = vadd.f32 %v1200, %v1203
    %vm1205 = vweird.f32 %v1157
    %vm1206 = vweird.f32 %v1200
    %vm1207 = vmor %vm1205, %vm1206
    %v1208 = vsel %vm1207, %v1200, %v1204
    %v1209 = vand.u32 2147483647, %v1157
    %vm1210 = vcmp.eq.f32.partialorder %v1209, 8.507059e+37
    %v1211 = vand.u32 %v1157, 2147483648
    %v1212 = vor.u32 1.1754944e-38, %v1211
    %v1213 = vsel %vm1210, %v1212, %v1208
    %v1214 = vmul.f32 %v1139, %v1171
    %v1215 = vmul.f32 %v1141, %v1185
    %v1216 = vmul.f32 %v1143, %v1199
    %v1217 = vmul.f32 %v1145, %v1213
    %v1218 = vpack.c.bf16 %v1214, %v1214
    %v1219 = vpack.c.bf16 %v1215, %v1215
    %v1220 = vpack.c.bf16 %v1216, %v1216
    %v1221 = vpack.c.bf16 %v1217, %v1217
    %v1224 = vunpack.c.l.b16 %v1218
    %v1225 = vunpack.c.l.b16 %v1219
    %v1226 = vpack.c.b16 %v1225, %v1224
    %1227 = vrot.lane.b32.xlu0 %v1018, 48
    %v1228 = vpop.permute.xlu0 %1227
    %v1231 = vsel %vm856, %v1226, 0
    %1233 = vmatpush.bf16.msra.mxu0 0
    %1234 = vmatpush.bf16.msra.mxu0 0
    %1235 = vmatpush.bf16.msra.mxu0 0
    %1236 = vmatpush.bf16.msra.mxu0 0
    %1237 = vmatpush.bf16.msra.mxu0 0
    %1238 = vmatpush.bf16.msra.mxu0 0
    %1239 = vmatpush.bf16.msra.mxu0 0
    %1240 = vmatpush.bf16.msra.mxu0 %v1228
    %1241 = vmatmul.bf16.gmra.mxu0 %v1231
    %v1242 = vpop.f32.mrf.mxu0
    %v1243 = vadd.f32 0.0, %v1242
    %v1244 = vpop.f32.mrf.mxu0
    %v1245 = vadd.f32 0.0, %v1244
    %1246 = vdwg.mxu0
    %v1249 = vunpack.c.l.b16 %v1220
    %v1250 = vunpack.c.l.b16 %v1221
    %v1251 = vpack.c.b16 %v1250, %v1249
    %1252 = vrot.lane.b32.xlu0 %v1048, 48
    %v1253 = vpop.permute.xlu0 %1252
    %v1256 = vsel %vm856, %v1251, 0
    %1258 = vmatpush.bf16.msra.mxu0 0
    %1259 = vmatpush.bf16.msra.mxu0 0
    %1260 = vmatpush.bf16.msra.mxu0 0
    %1261 = vmatpush.bf16.msra.mxu0 0
    %1262 = vmatpush.bf16.msra.mxu0 0
    %1263 = vmatpush.bf16.msra.mxu0 0
    %1264 = vmatpush.bf16.msra.mxu0 0
    %1265 = vmatpush.bf16.msra.mxu0 %v1253
    %1266 = vmatmul.bf16.gmra.mxu0 %v1256
    %v1267 = vpop.f32.mrf.mxu0
    %v1268 = vadd.f32 0.0, %v1267
    %v1269 = vpop.f32.mrf.mxu0
    %v1270 = vadd.f32 0.0, %v1269
    %1271 = vdwg.mxu0
    %v1272 = vsel %vm856, %v1243, 0.0
    %v1273 = vsel %vm856, %v1268, 0.0
    %v1274 = vadd.f32 %v1272, %v1273
    %v1275 = vsel %vm856, %v1245, 0.0
    %v1276 = vsel %vm856, %v1270, 0.0
    %v1277 = vadd.f32 %v1275, %v1276
    %1280 = vrot.lane.b32.xlu0 %v1274, 16
    %v1281 = vpop.permute.xlu0 %1280
    %1282 = vrot.lane.b32.xlu0 %v1277, 16
    %v1283 = vpop.permute.xlu0 %1282
    %v1286 = vsel %vm856, %v1071, %v1281
    %v1287 = vsel %vm856, %v1074, %v1283
    %v1288 = vld [vmem:[%s9] sm:$0xf]
    %v1289 = vld [vmem:[%s9 + $0x4] sm:$0xf]
    %v1290 = vld [vmem:[%s9 + $0x8] sm:$0xf]
    %v1291 = vld [vmem:[%s9 + $0xc] sm:$0xf]
    %v1292 = vpack.c.bf16 %v1287, %v1286
    %v1297 = vunpack.c.l.b16 %v1288
    %v1298 = vunpack.c.l.b16 %v1289
    %v1299 = vunpack.c.l.b16 %v1290
    %v1300 = vunpack.c.l.b16 %v1291
    %v1301 = vpack.c.b16 %v1298, %v1297
    %v1302 = vpack.c.b16 %v1300, %v1299
    %v1306 = vsel %vm67, %v1292, 0
    %1308 = vmatpush.bf16.msra.mxu0 0
    %1309 = vmatpush.bf16.msra.mxu0 0
    %1310 = vmatpush.bf16.msra.mxu0 0
    %1311 = vmatpush.bf16.msra.mxu0 0
    %1312 = vmatpush.bf16.msra.mxu0 0
    %1313 = vmatpush.bf16.msra.mxu0 0
    %1314 = vmatpush.bf16.msra.mxu0 %v1302
    %1315 = vmatpush.bf16.msra.mxu0 %v1301
    %1316 = vmatmul.bf16.gmra.mxu0 %v1306
    %v1317 = vpop.f32.mrf.mxu0
    %v1318 = vadd.f32 0.0, %v1317
    %v1319 = vpop.f32.mrf.mxu0
    %v1320 = vadd.f32 0.0, %v1319
    %1321 = vdwg.mxu0
    %v1322 = vld [vmem:[%s10] sm:$0x1]
    %v1324 = vperm.slane %v1322, 0
    %v1326 = vadd.f32 %v40, %v1324
    %v1327 = vadd.f32 %v41, %v1324
    %v1328 = vmul.f32 %v1326, 2.0
    %v1329 = vmul.f32 %v1327, 2.0
    %v1330 = vadd.f32 %v1328, %v1318
    %v1331 = vadd.f32 %v1329, %v1320
    %v1332 = vld [vmem:[%s2] sm:$0x7]
    %s1333 = scalar_lea.vmem %s2, 4
    %v1334 = vld [vmem:[%s1333] sm:$0x7]
    %s1335 = scalar_lea.vmem %s2, 8
    %v1336 = vld [vmem:[%s1335] sm:$0x7]
    %s1337 = scalar_lea.vmem %s2, 12
    %v1338 = vld [vmem:[%s1337] sm:$0x7]
    %v1339 = vmul.f32 %v1338, 1.442695
    %v1340 = vpow.pop %v1339
    %s1341 = scalar_lea.vmem %s2, 16
    %v1342 = vld [vmem:[%s1341] sm:$0x7]
    %v1343 = vmul.f32 %v1342, 1.442695
    %v1344 = vpow.pop %v1343
    %s1345 = scalar_lea.vmem %s2, 20
    %v1346 = vld [vmem:[%s1345] sm:$0x7]
    %v1347 = vmul.f32 %v1346, 1.442695
    %v1348 = vpow.pop %v1347
    %s1349 = scalar_lea.vmem %s2, 24
    %v1350 = vld [vmem:[%s1349] sm:$0x7]
    %v1351 = vand.u32 2147483647, %v1350
    %s1352 = scalar_lea.vmem %s2, 28
    %v1353 = vld [vmem:[%s1352] sm:$0x7]
    %v1354 = vand.u32 2147483647, %v1353
    %v1355 = vmul.f32 %v1354, %v1340
    %v1356 = vmul.f32 %v1351, %v1344
    %v1357 = vadd.f32 %v1355, %v1356
    %v1358 = vmul.f32 %v1357, 0.5
    %v1359 = vmul.f32 %v1351, %v1340
    %v1360 = vmul.f32 %v1354, %v1344
    %v1361 = vadd.f32 %v1359, %v1360
    %v1362 = vmul.f32 %v1361, 0.5
    %v1363 = vmul.f32 %v1348, 0.5
    %v1364 = vld [vmem:[%s3] sm:$0x7]
    %v1365 = vsub.f32 %v1332, %v1358
    %v1366 = vadd.f32 %v1332, %v1358
    %v1368 = vrot.slane %v1364, 1
    %v1369 = vrot.slane %v1364, 2
    %v1370 = vperm.slane %v1365, 0
    %v1371 = vlaneseq
    %v1372 = vshrl.u32 %v1371, 7
    %1374 = vset.pattern.permute.xlu0 %v1372
    %1375 = vperm.xlu0 %1374, %v1370
    %v1376 = vpop.permute.xlu0 %1375
    %v1377 = vlaneseq
    %v1378 = vshrl.u32 %v1377, 7
    %v1379 = vadd.s32 %v1378, 8
    %1380 = vset.pattern.permute.xlu0 %v1379
    %1381 = vperm.xlu0 %1380, %v1370
    %v1382 = vpop.permute.xlu0 %1381
    %v1383 = vperm.slane %v1365, 1
    %v1384 = vlaneseq
    %v1385 = vshrl.u32 %v1384, 7
    %1387 = vset.pattern.permute.xlu0 %v1385
    %1388 = vperm.xlu0 %1387, %v1383
    %v1389 = vpop.permute.xlu0 %1388
    %v1390 = vlaneseq
    %v1391 = vshrl.u32 %v1390, 7
    %v1392 = vadd.s32 %v1391, 8
    %1393 = vset.pattern.permute.xlu0 %v1392
    %1394 = vperm.xlu0 %1393, %v1383
    %v1395 = vpop.permute.xlu0 %1394
    %v1396 = vperm.slane %v1365, 2
    %v1397 = vlaneseq
    %v1398 = vshrl.u32 %v1397, 7
    %1400 = vset.pattern.permute.xlu0 %v1398
    %1401 = vperm.xlu0 %1400, %v1396
    %v1402 = vpop.permute.xlu0 %1401
    %v1403 = vlaneseq
    %v1404 = vshrl.u32 %v1403, 7
    %v1405 = vadd.s32 %v1404, 8
    %1406 = vset.pattern.permute.xlu0 %v1405
    %1407 = vperm.xlu0 %1406, %v1396
    %v1408 = vpop.permute.xlu0 %1407
    %v1409 = vperm.slane %v1364, 0
    %v1410 = vperm.slane %v1368, 0
    %v1411 = vperm.slane %v1369, 0
    %vm1415 = vcmp.ge.f32.partialorder %v1409, %v1376
    %vm1416 = vcmp.ge.f32.partialorder %v1409, %v1382
    %vm1417 = vcmp.ge.f32.partialorder %v1410, %v1389
    %vm1418 = vcmp.ge.f32.partialorder %v1410, %v1395
    %vm1419 = vcmp.ge.f32.partialorder %v1411, %v1402
    %vm1420 = vcmp.ge.f32.partialorder %v1411, %v1408
    %v1421 = vperm.slane %v1366, 0
    %v1422 = vlaneseq
    %v1423 = vshrl.u32 %v1422, 7
    %1425 = vset.pattern.permute.xlu0 %v1423
    %1426 = vperm.xlu0 %1425, %v1421
    %v1427 = vpop.permute.xlu0 %1426
    %v1428 = vlaneseq
    %v1429 = vshrl.u32 %v1428, 7
    %v1430 = vadd.s32 %v1429, 8
    %1431 = vset.pattern.permute.xlu0 %v1430
    %1432 = vperm.xlu0 %1431, %v1421
    %v1433 = vpop.permute.xlu0 %1432
    %v1434 = vperm.slane %v1366, 1
    %v1435 = vlaneseq
    %v1436 = vshrl.u32 %v1435, 7
    %1438 = vset.pattern.permute.xlu0 %v1436
    %1439 = vperm.xlu0 %1438, %v1434
    %v1440 = vpop.permute.xlu0 %1439
    %v1441 = vlaneseq
    %v1442 = vshrl.u32 %v1441, 7
    %v1443 = vadd.s32 %v1442, 8
    %1444 = vset.pattern.permute.xlu0 %v1443
    %1445 = vperm.xlu0 %1444, %v1434
    %v1446 = vpop.permute.xlu0 %1445
    %v1447 = vperm.slane %v1366, 2
    %v1448 = vlaneseq
    %v1449 = vshrl.u32 %v1448, 7
    %1451 = vset.pattern.permute.xlu0 %v1449
    %1452 = vperm.xlu0 %1451, %v1447
    %v1453 = vpop.permute.xlu0 %1452
    %v1454 = vlaneseq
    %v1455 = vshrl.u32 %v1454, 7
    %v1456 = vadd.s32 %v1455, 8
    %1457 = vset.pattern.permute.xlu0 %v1456
    %1458 = vperm.xlu0 %1457, %v1447
    %v1459 = vpop.permute.xlu0 %1458
    %vm1460 = vcmp.le.f32.partialorder %v1409, %v1427
    %vm1461 = vcmp.le.f32.partialorder %v1409, %v1433
    %vm1462 = vcmp.le.f32.partialorder %v1410, %v1440
    %vm1463 = vcmp.le.f32.partialorder %v1410, %v1446
    %vm1464 = vcmp.le.f32.partialorder %v1411, %v1453
    %vm1465 = vcmp.le.f32.partialorder %v1411, %v1459
    %vm1466 = vmand %vm1415, %vm1460
    %vm1467 = vmand %vm1416, %vm1461
    %vm1468 = vmand %vm1417, %vm1462
    %vm1469 = vmand %vm1418, %vm1463
    %vm1470 = vmand %vm1419, %vm1464
    %vm1471 = vmand %vm1420, %vm1465
    %s1472 = scalar_lea.vmem %s3, 4
    %v1473 = vld [vmem:[%s1472] sm:$0x7]
    %v1474 = vsub.f32 %v1334, %v1362
    %v1475 = vadd.f32 %v1334, %v1362
    %v1477 = vrot.slane %v1473, 1
    %v1478 = vrot.slane %v1473, 2
    %v1479 = vperm.slane %v1474, 0
    %v1480 = vlaneseq
    %v1481 = vshrl.u32 %v1480, 7
    %1483 = vset.pattern.permute.xlu0 %v1481
    %1484 = vperm.xlu0 %1483, %v1479
    %v1485 = vpop.permute.xlu0 %1484
    %v1486 = vlaneseq
    %v1487 = vshrl.u32 %v1486, 7
    %v1488 = vadd.s32 %v1487, 8
    %1489 = vset.pattern.permute.xlu0 %v1488
    %1490 = vperm.xlu0 %1489, %v1479
    %v1491 = vpop.permute.xlu0 %1490
    %v1492 = vperm.slane %v1474, 1
    %v1493 = vlaneseq
    %v1494 = vshrl.u32 %v1493, 7
    %1496 = vset.pattern.permute.xlu0 %v1494
    %1497 = vperm.xlu0 %1496, %v1492
    %v1498 = vpop.permute.xlu0 %1497
    %v1499 = vlaneseq
    %v1500 = vshrl.u32 %v1499, 7
    %v1501 = vadd.s32 %v1500, 8
    %1502 = vset.pattern.permute.xlu0 %v1501
    %1503 = vperm.xlu0 %1502, %v1492
    %v1504 = vpop.permute.xlu0 %1503
    %v1505 = vperm.slane %v1474, 2
    %v1506 = vlaneseq
    %v1507 = vshrl.u32 %v1506, 7
    %1509 = vset.pattern.permute.xlu0 %v1507
    %1510 = vperm.xlu0 %1509, %v1505
    %v1511 = vpop.permute.xlu0 %1510
    %v1512 = vlaneseq
    %v1513 = vshrl.u32 %v1512, 7
    %v1514 = vadd.s32 %v1513, 8
    %1515 = vset.pattern.permute.xlu0 %v1514
    %1516 = vperm.xlu0 %1515, %v1505
    %v1517 = vpop.permute.xlu0 %1516
    %v1518 = vperm.slane %v1473, 0
    %v1519 = vperm.slane %v1477, 0
    %v1520 = vperm.slane %v1478, 0
    %vm1524 = vcmp.ge.f32.partialorder %v1518, %v1485
    %vm1525 = vcmp.ge.f32.partialorder %v1518, %v1491
    %vm1526 = vcmp.ge.f32.partialorder %v1519, %v1498
    %vm1527 = vcmp.ge.f32.partialorder %v1519, %v1504
    %vm1528 = vcmp.ge.f32.partialorder %v1520, %v1511
    %vm1529 = vcmp.ge.f32.partialorder %v1520, %v1517
    %v1530 = vperm.slane %v1475, 0
    %v1531 = vlaneseq
    %v1532 = vshrl.u32 %v1531, 7
    %1534 = vset.pattern.permute.xlu0 %v1532
    %1535 = vperm.xlu0 %1534, %v1530
    %v1536 = vpop.permute.xlu0 %1535
    %v1537 = vlaneseq
    %v1538 = vshrl.u32 %v1537, 7
    %v1539 = vadd.s32 %v1538, 8
    %1540 = vset.pattern.permute.xlu0 %v1539
    %1541 = vperm.xlu0 %1540, %v1530
    %v1542 = vpop.permute.xlu0 %1541
    %v1543 = vperm.slane %v1475, 1
    %v1544 = vlaneseq
    %v1545 = vshrl.u32 %v1544, 7
    %1547 = vset.pattern.permute.xlu0 %v1545
    %1548 = vperm.xlu0 %1547, %v1543
    %v1549 = vpop.permute.xlu0 %1548
    %v1550 = vlaneseq
    %v1551 = vshrl.u32 %v1550, 7
    %v1552 = vadd.s32 %v1551, 8
    %1553 = vset.pattern.permute.xlu0 %v1552
    %1554 = vperm.xlu0 %1553, %v1543
    %v1555 = vpop.permute.xlu0 %1554
    %v1556 = vperm.slane %v1475, 2
    %v1557 = vlaneseq
    %v1558 = vshrl.u32 %v1557, 7
    %1560 = vset.pattern.permute.xlu0 %v1558
    %1561 = vperm.xlu0 %1560, %v1556
    %v1562 = vpop.permute.xlu0 %1561
    %v1563 = vlaneseq
    %v1564 = vshrl.u32 %v1563, 7
    %v1565 = vadd.s32 %v1564, 8
    %1566 = vset.pattern.permute.xlu0 %v1565
    %1567 = vperm.xlu0 %1566, %v1556
    %v1568 = vpop.permute.xlu0 %1567
    %vm1569 = vcmp.le.f32.partialorder %v1518, %v1536
    %vm1570 = vcmp.le.f32.partialorder %v1518, %v1542
    %vm1571 = vcmp.le.f32.partialorder %v1519, %v1549
    %vm1572 = vcmp.le.f32.partialorder %v1519, %v1555
    %vm1573 = vcmp.le.f32.partialorder %v1520, %v1562
    %vm1574 = vcmp.le.f32.partialorder %v1520, %v1568
    %vm1575 = vmand %vm1524, %vm1569
    %vm1576 = vmand %vm1525, %vm1570
    %vm1577 = vmand %vm1526, %vm1571
    %vm1578 = vmand %vm1527, %vm1572
    %vm1579 = vmand %vm1528, %vm1573
    %vm1580 = vmand %vm1529, %vm1574
    %vm1581 = vmand %vm1466, %vm1575
    %vm1582 = vmand %vm1467, %vm1576
    %vm1583 = vmand %vm1468, %vm1577
    %vm1584 = vmand %vm1469, %vm1578
    %vm1585 = vmand %vm1470, %vm1579
    %vm1586 = vmand %vm1471, %vm1580
    %s1587 = scalar_lea.vmem %s3, 8
    %v1588 = vld [vmem:[%s1587] sm:$0x7]
    %v1589 = vsub.f32 %v1336, %v1363
    %v1590 = vadd.f32 %v1336, %v1363
    %v1592 = vrot.slane %v1588, 1
    %v1593 = vrot.slane %v1588, 2
    %v1594 = vperm.slane %v1589, 0
    %v1595 = vlaneseq
    %v1596 = vshrl.u32 %v1595, 7
    %1598 = vset.pattern.permute.xlu0 %v1596
    %1599 = vperm.xlu0 %1598, %v1594
    %v1600 = vpop.permute.xlu0 %1599
    %v1601 = vlaneseq
    %v1602 = vshrl.u32 %v1601, 7
    %v1603 = vadd.s32 %v1602, 8
    %1604 = vset.pattern.permute.xlu0 %v1603
    %1605 = vperm.xlu0 %1604, %v1594
    %v1606 = vpop.permute.xlu0 %1605
    %v1607 = vperm.slane %v1589, 1
    %v1608 = vlaneseq
    %v1609 = vshrl.u32 %v1608, 7
    %1611 = vset.pattern.permute.xlu0 %v1609
    %1612 = vperm.xlu0 %1611, %v1607
    %v1613 = vpop.permute.xlu0 %1612
    %v1614 = vlaneseq
    %v1615 = vshrl.u32 %v1614, 7
    %v1616 = vadd.s32 %v1615, 8
    %1617 = vset.pattern.permute.xlu0 %v1616
    %1618 = vperm.xlu0 %1617, %v1607
    %v1619 = vpop.permute.xlu0 %1618
    %v1620 = vperm.slane %v1589, 2
    %v1621 = vlaneseq
    %v1622 = vshrl.u32 %v1621, 7
    %1624 = vset.pattern.permute.xlu0 %v1622
    %1625 = vperm.xlu0 %1624, %v1620
    %v1626 = vpop.permute.xlu0 %1625
    %v1627 = vlaneseq
    %v1628 = vshrl.u32 %v1627, 7
    %v1629 = vadd.s32 %v1628, 8
    %1630 = vset.pattern.permute.xlu0 %v1629
    %1631 = vperm.xlu0 %1630, %v1620
    %v1632 = vpop.permute.xlu0 %1631
    %v1633 = vperm.slane %v1588, 0
    %v1634 = vperm.slane %v1592, 0
    %v1635 = vperm.slane %v1593, 0
    %vm1639 = vcmp.ge.f32.partialorder %v1633, %v1600
    %vm1640 = vcmp.ge.f32.partialorder %v1633, %v1606
    %vm1641 = vcmp.ge.f32.partialorder %v1634, %v1613
    %vm1642 = vcmp.ge.f32.partialorder %v1634, %v1619
    %vm1643 = vcmp.ge.f32.partialorder %v1635, %v1626
    %vm1644 = vcmp.ge.f32.partialorder %v1635, %v1632
    %v1645 = vperm.slane %v1590, 0
    %v1646 = vlaneseq
    %v1647 = vshrl.u32 %v1646, 7
    %1649 = vset.pattern.permute.xlu0 %v1647
    %1650 = vperm.xlu0 %1649, %v1645
    %v1651 = vpop.permute.xlu0 %1650
    %v1652 = vlaneseq
    %v1653 = vshrl.u32 %v1652, 7
    %v1654 = vadd.s32 %v1653, 8
    %1655 = vset.pattern.permute.xlu0 %v1654
    %1656 = vperm.xlu0 %1655, %v1645
    %v1657 = vpop.permute.xlu0 %1656
    %v1658 = vperm.slane %v1590, 1
    %v1659 = vlaneseq
    %v1660 = vshrl.u32 %v1659, 7
    %1662 = vset.pattern.permute.xlu0 %v1660
    %1663 = vperm.xlu0 %1662, %v1658
    %v1664 = vpop.permute.xlu0 %1663
    %v1665 = vlaneseq
    %v1666 = vshrl.u32 %v1665, 7
    %v1667 = vadd.s32 %v1666, 8
    %1668 = vset.pattern.permute.xlu0 %v1667
    %1669 = vperm.xlu0 %1668, %v1658
    %v1670 = vpop.permute.xlu0 %1669
    %v1671 = vperm.slane %v1590, 2
    %v1672 = vlaneseq
    %v1673 = vshrl.u32 %v1672, 7
    %1675 = vset.pattern.permute.xlu0 %v1673
    %1676 = vperm.xlu0 %1675, %v1671
    %v1677 = vpop.permute.xlu0 %1676
    %v1678 = vlaneseq
    %v1679 = vshrl.u32 %v1678, 7
    %v1680 = vadd.s32 %v1679, 8
    %1681 = vset.pattern.permute.xlu0 %v1680
    %1682 = vperm.xlu0 %1681, %v1671
    %v1683 = vpop.permute.xlu0 %1682
    %vm1684 = vcmp.le.f32.partialorder %v1633, %v1651
    %vm1685 = vcmp.le.f32.partialorder %v1633, %v1657
    %vm1686 = vcmp.le.f32.partialorder %v1634, %v1664
    %vm1687 = vcmp.le.f32.partialorder %v1634, %v1670
    %vm1688 = vcmp.le.f32.partialorder %v1635, %v1677
    %vm1689 = vcmp.le.f32.partialorder %v1635, %v1683
    %vm1690 = vmand %vm1639, %vm1684
    %vm1691 = vmand %vm1640, %vm1685
    %vm1692 = vmand %vm1641, %vm1686
    %vm1693 = vmand %vm1642, %vm1687
    %vm1694 = vmand %vm1643, %vm1688
    %vm1695 = vmand %vm1644, %vm1689
    %vm1696 = vmand %vm1581, %vm1690
    %vm1697 = vmand %vm1582, %vm1691
    %vm1698 = vmand %vm1583, %vm1692
    %vm1699 = vmand %vm1584, %vm1693
    %vm1700 = vmand %vm1585, %vm1694
    %vm1701 = vmand %vm1586, %vm1695
    %v1702 = vlaneseq
    %v1703 = vshrl.u32 %v1702, 7
    %v1704 = vmul.u32 %v1703, 16
    %vm1705 = vcmp.ge.s32.totalorder %v616, %v1704
    %v1706 = vadd.s32 %v1703, 1
    %v1707 = vmul.u32 %v1706, 16
    %vm1708 = vcmp.lt.s32.totalorder %v616, %v1707
    %vm1709 = vmand %vm1705, %vm1708
    %v1710 = vsel %vm1709, 0.0, 1.0
    %v1711 = vsel %vm1696, 1.0, 0.0
    %v1712 = vsel %vm1697, 1.0, 0.0
    %v1713 = vsel %vm1698, 1.0, 0.0
    %v1714 = vsel %vm1699, 1.0, 0.0
    %v1715 = vsel %vm1700, 1.0, 0.0
    %v1716 = vsel %vm1701, 1.0, 0.0
    %v1718 = vrot.slane %v1710, 1
    %v1719 = vrot.slane %v1710, 2
    %v1720 = vperm.slane %v1710, 0
    %v1721 = vperm.slane %v1718, 0
    %v1722 = vperm.slane %v1719, 0
    %v1726 = vmul.f32 %v1711, %v1720
    %v1727 = vmul.f32 %v1712, %v1720
    %v1728 = vmul.f32 %v1713, %v1721
    %v1729 = vmul.f32 %v1714, %v1721
    %v1730 = vmul.f32 %v1715, %v1722
    %v1731 = vmul.f32 %v1716, %v1722
    %v1732 = vperm.slane %v767, 0
    %v1733 = vlaneseq
    %v1734 = vshrl.u32 %v1733, 7
    %1736 = vset.pattern.permute.xlu0 %v1734
    %1737 = vperm.xlu0 %1736, %v1732
    %v1738 = vpop.permute.xlu0 %1737
    %v1739 = vlaneseq
    %v1740 = vshrl.u32 %v1739, 7
    %v1741 = vadd.s32 %v1740, 8
    %1742 = vset.pattern.permute.xlu0 %v1741
    %1743 = vperm.xlu0 %1742, %v1732
    %v1744 = vpop.permute.xlu0 %1743
    %v1745 = vperm.slane %v767, 1
    %v1746 = vlaneseq
    %v1747 = vshrl.u32 %v1746, 7
    %1749 = vset.pattern.permute.xlu0 %v1747
    %1750 = vperm.xlu0 %1749, %v1745
    %v1751 = vpop.permute.xlu0 %1750
    %v1752 = vlaneseq
    %v1753 = vshrl.u32 %v1752, 7
    %v1754 = vadd.s32 %v1753, 8
    %1755 = vset.pattern.permute.xlu0 %v1754
    %1756 = vperm.xlu0 %1755, %v1745
    %v1757 = vpop.permute.xlu0 %1756
    %v1758 = vperm.slane %v767, 2
    %v1759 = vlaneseq
    %v1760 = vshrl.u32 %v1759, 7
    %1762 = vset.pattern.permute.xlu0 %v1760
    %1763 = vperm.xlu0 %1762, %v1758
    %v1764 = vpop.permute.xlu0 %1763
    %v1765 = vlaneseq
    %v1766 = vshrl.u32 %v1765, 7
    %v1767 = vadd.s32 %v1766, 8
    %1768 = vset.pattern.permute.xlu0 %v1767
    %1769 = vperm.xlu0 %1768, %v1758
    %v1770 = vpop.permute.xlu0 %1769
    %v1771 = vmul.f32 %v40, %v1738
    %v1772 = vmul.f32 %v41, %v1744
    %v1773 = vmul.f32 %v42, %v1751
    %v1774 = vmul.f32 %v43, %v1757
    %v1775 = vmul.f32 %v44, %v1764
    %v1776 = vmul.f32 %v45, %v1770
    %vm1777 = vcmask 392192
    %v1779 = vsel %vm1777, %v1726, 0
    %v1782 = vsel %vm1777, %v1727, 0
    %v1785 = vsel %vm1777, %v1728, 0
    %v1788 = vsel %vm1777, %v1729, 0
    %v1791 = vsel %vm1777, %v1730, 0
    %v1794 = vsel %vm1777, %v1731, 0
    %1796 = vmatpush.msra.mxu0 0.0
    %1797 = vmatpush.msra.mxu0 0.0
    %1798 = vmatpush.msra.mxu0 0.0
    %1799 = vmatpush.msra.mxu0 0.0
    %1800 = vmatpush.msra.mxu0 0.0
    %1801 = vmatpush.msra.mxu0 0.0
    %1802 = vmatpush.msra.mxu0 0.0
    %1803 = vmatpush.msra.mxu0 0.0
    %1804 = vmatpush.msra.mxu0 0.0
    %1805 = vmatpush.msra.mxu0 0.0
    %1806 = vmatpush.msra.mxu0 %v1776
    %1807 = vmatpush.msra.mxu0 %v1775
    %1808 = vmatpush.msra.mxu0 %v1774
    %1809 = vmatpush.msra.mxu0 %v1773
    %1810 = vmatpush.msra.mxu0 %v1772
    %1811 = vmatpush.msra.mxu0 %v1771
    %1812 = vmatmul.f32.gmra.mxu0 %v1779
    %v1813 = vpop.f32.mrf.mxu0
    %v1814 = vadd.f32 0.0, %v1813
    %1815 = vmatmul.f32.gmra.mxu0 %v1782
    %v1816 = vpop.f32.mrf.mxu0
    %v1817 = vadd.f32 0.0, %v1816
    %1818 = vmatmul.f32.gmra.mxu0 %v1785
    %v1819 = vpop.f32.mrf.mxu0
    %v1820 = vadd.f32 0.0, %v1819
    %1821 = vmatmul.f32.gmra.mxu0 %v1788
    %v1822 = vpop.f32.mrf.mxu0
    %v1823 = vadd.f32 0.0, %v1822
    %1824 = vmatmul.f32.gmra.mxu0 %v1791
    %v1825 = vpop.f32.mrf.mxu0
    %v1826 = vadd.f32 0.0, %v1825
    %1827 = vmatmul.f32.gmra.mxu0 %v1794
    %v1828 = vpop.f32.mrf.mxu0
    %v1829 = vadd.f32 0.0, %v1828
    %1830 = vdwg.mxu0
    %v1831 = vadd.f32 %v1330, %v1814
    %v1832 = vadd.f32 %v1331, %v1817
    %v1833 = vadd.f32 %v1330, %v1820
    %v1834 = vadd.f32 %v1331, %v1823
    %v1835 = vadd.f32 %v1330, %v1826
    %v1836 = vadd.f32 %v1331, %v1829
    %1837 = vst.msk [vmem:[#allocation2] sm:$0xff] %vm67, %v1831
    %1838 = vst.msk [vmem:[#allocation2 + $0x8] sm:$0xff] %vm67, %v1832
    %1839 = vst.msk [vmem:[#allocation2 + $0x10] sm:$0xff] %vm67, %v1833
    %1840 = vst.msk [vmem:[#allocation2 + $0x18] sm:$0xff] %vm67, %v1834
    %1841 = vst.msk [vmem:[#allocation2 + $0x20] sm:$0xff] %vm67, %v1835
    %1842 = vst.msk [vmem:[#allocation2 + $0x28] sm:$0xff] %vm67, %v1836
    // Predicated region
    $region46: #{point_encoder_v6_forward.1} parent=1 // pred_check
      _
    $region47: #{point_encoder_v6_forward.1} parent=1 // pred_check_branch
      %1844 = sbr.rel (0) target = $region49
    $region48: #{point_encoder_v6_forward.1} parent=1 // pred_region
      %1846 = vsyncadd [#allocation3], 0
      %s1847 = sshll.u32 [#allocation2], 4
      %s1848 = int_to_ptr.vmem [resolvable:$true] %s1847
      %s1849 = sshll.u32 %s11, 4
      %s1850 = int_to_ptr.hbm [resolvable:$true] %s1849
      %1855 = dma.vmem_to_hbm [thread:$0]  %s1848, 768, %s1850, [#allocation3], 128, 128, 8
    $region49: #{point_encoder_v6_forward.1} parent=1 // pred_fallthru
      _
    // Predicated region
    $region50: #{point_encoder_v6_forward.1} parent=1 // pred_check
      _
    $region51: #{point_encoder_v6_forward.1} parent=1 // pred_check_branch
      %1857 = sbr.rel (0) target = $region53
    $region52: #{point_encoder_v6_forward.1} parent=1 // pred_region
      %1859 = dma.done [#allocation3], 768
    $region53: #{point_encoder_v6_forward.1} parent=1 // pred_fallthru
      _
    %1860 = vsyncpa [#allocation3], 1

</llo_original>
